<compile_context>
chip_gen: v7x
topology: tpu7x:2x2x1
jax: 0.10.0
libtpu: 0.0.40
codegen_flags: <defaults>
</compile_context>

<pallas_src>
import functools

import numpy as np
import jax
import jax.numpy as jnp
from jax.experimental import pallas as pl
from jax.experimental.pallas import tpu as pltpu


def _cnn_lstm_kernel(x_ref, wconv_ref, bconv_ref, wih_ref, whh_ref, blstm_ref,
                     w1_ref, b1_ref, w2_ref, b2_ref, idx_ref,
                     o_ref, xg_scr, *, T_c, C, K, HP):
    HP4 = 4 * HP
    xb = x_ref[...]                                   # (T, F) float32
    F_in = xb.shape[1]

    # ---- Conv2d(1, C, (K, 1), valid) fused with the LSTM input projection ----
    # z_c[t, f] = bconv[c] + sum_k wconv[c, k] * x[t + k, f]
    # xg[t, :]  = sum_c z_c[t, :] @ Wih_c + (b_ih + b_hh)   (gate-padded to 4*HP)
    acc = jnp.zeros((T_c, HP4), jnp.float32)
    for c in range(C):
        z_c = jnp.zeros((T_c, F_in), jnp.float32) + bconv_ref[c]      # (1,1) bcast
        for k in range(K):
            z_c = z_c + wconv_ref[c * K + k] * xb[k:k + T_c, :]
        acc = acc + jnp.dot(z_c.astype(jnp.bfloat16), wih_ref[c],
                            preferred_element_type=jnp.float32)
    xg_scr[...] = acc + blstm_ref[...]                # (T_c, 4*HP) float32

    # ---- LSTM recurrence (inherently sequential over time) -------------------
    whh = whh_ref[...]                                # (HP, 4*HP) bfloat16
    idx = idx_ref[...]                                # (1, 1) int32: lengths-K-1

    def sigmoid(v):                                   # one EUP tanh per gate
        return 0.5 * (jnp.tanh(0.5 * v) + 1.0)

    zero = jnp.zeros((1, HP), jnp.float32)

    def step(t, carry):
        h, c_st, h_sel = carry
        g = xg_scr[pl.ds(t, 1), :] + jnp.dot(h.astype(jnp.bfloat16), whh,
                                             preferred_element_type=jnp.float32)
        i_g = sigmoid(g[:, 0 * HP:1 * HP])            # PyTorch gate order i,f,g,o
        f_g = sigmoid(g[:, 1 * HP:2 * HP])
        g_g = jnp.tanh(g[:, 2 * HP:3 * HP])
        o_g = sigmoid(g[:, 3 * HP:4 * HP])
        c_st = f_g * c_st + i_g * g_g
        h = o_g * jnp.tanh(c_st)
        h_sel = jnp.where(idx == t, h, h_sel)         # capture output at idx
        return h, c_st, h_sel

    _, _, h_sel = jax.lax.fori_loop(0, T_c, step, (zero, zero, zero))

    # ---- MLP head + softmax ---------------------------------------------------
    hid = jnp.maximum(
        jnp.dot(h_sel.astype(jnp.bfloat16), w1_ref[...],
                preferred_element_type=jnp.float32) + b1_ref[...], 0.0)
    logits = jnp.dot(hid.astype(jnp.bfloat16), w2_ref[...],
                     preferred_element_type=jnp.float32) + b2_ref[...]
    m = jnp.max(logits, axis=-1, keepdims=True)       # padded lanes are -1e30
    e = jnp.exp(logits - m)
    s = jnp.sum(e, axis=-1, keepdims=True)
    # Exact division: probabilities must sum to 1 (approx reciprocal was ~1e-3 off
    # and this is a single (1, 128) row, so the exact divide costs nothing).
    o_ref[...] = e / s


def _round_up(n, m):
    return ((n + m - 1) // m) * m


def cnn_lstm_forward(x, lengths, params, *, kernel_size):
    """CNN_LSTMModel.forward(x, lengths) via one fused Pallas TPU kernel."""
    x = jnp.asarray(x, jnp.float32)
    B, T, F = x.shape
    K = kernel_size

    wconv = np.asarray(params["wconv"], np.float32)           # (C, K)
    bconv = np.asarray(params["bconv"], np.float32)           # (C,)
    Wih = np.asarray(params["Wih"], np.float32)               # (4H, C*F)
    Whh = np.asarray(params["Whh"], np.float32)               # (4H, H)
    b_l = np.asarray(params["bih"], np.float32) + np.asarray(params["bhh"], np.float32)
    W1 = np.asarray(params["W1"], np.float32)                 # (HID, H)
    b1 = np.asarray(params["b1"], np.float32)                 # (HID,)
    W2 = np.asarray(params["W2"], np.float32)                 # (NC, HID)
    b2 = np.asarray(params["b2"], np.float32)                 # (NC,)

    C, H, HID, NC = wconv.shape[0], Whh.shape[1], W1.shape[0], W2.shape[0]
    T_c = T - K + 1
    assert T_c >= 1 and Wih.shape[1] == C * F

    # Lane-dense padding (multiples of 128); padded rows/cols are zero -> inert.
    HP, HIDP, NCP = (_round_up(n, 128) for n in (H, HID, NC))
    HP4 = 4 * HP

    # wih_pack[c, f, gate*HP + j] = Wih[gate*H + j, c*F + f]  (per-channel slices)
    wih_pack = np.zeros((C, F, HP4), np.float32)
    whh_pack = np.zeros((HP, HP4), np.float32)
    b_pack = np.zeros((1, HP4), np.float32)
    for gate in range(4):
        blk = Wih[gate * H:(gate + 1) * H, :].reshape(H, C, F)
        wih_pack[:, :, gate * HP:gate * HP + H] = blk.transpose(1, 2, 0)
        whh_pack[:H, gate * HP:gate * HP + H] = Whh[gate * H:(gate + 1) * H, :].T
        b_pack[0, gate * HP:gate * HP + H] = b_l[gate * H:(gate + 1) * H]

    w1_pack = np.zeros((HP, HIDP), np.float32); w1_pack[:H, :HID] = W1.T
    b1_pack = np.zeros((1, HIDP), np.float32);  b1_pack[0, :HID] = b1
    w2_pack = np.zeros((HIDP, NCP), np.float32); w2_pack[:HID, :NC] = W2.T
    # -1e30 on padded logit lanes -> exp underflows to 0, softmax stays exact.
    b2_pack = np.full((1, NCP), -1e30, np.float32); b2_pack[0, :NC] = b2

    # Time index selected by the module: (lengths - 1 - K + 1) - 1
    idx = np.asarray(lengths, np.int64).reshape(-1) - K - 1
    assert np.all((idx >= 0) & (idx < T_c)), "lengths incompatible with kernel_size/T"

    kernel = functools.partial(_cnn_lstm_kernel, T_c=T_c, C=C, K=K, HP=HP)

    out = pl.pallas_call(
        kernel,
        out_shape=jax.ShapeDtypeStruct((B, 1, NCP), jnp.float32),
        grid=(B,),
        in_specs=[
            pl.BlockSpec((pl.Squeezed(), T, F), lambda b: (b, 0, 0)),   # x
            pl.BlockSpec((C * K, 1, 1), lambda b: (0, 0, 0)),           # conv weight
            pl.BlockSpec((C, 1, 1), lambda b: (0, 0, 0)),               # conv bias
            pl.BlockSpec((C, F, HP4), lambda b: (0, 0, 0)),             # W_ih (bf16)
            pl.BlockSpec((HP, HP4), lambda b: (0, 0)),                  # W_hh (bf16)
            pl.BlockSpec((1, HP4), lambda b: (0, 0)),                   # b_ih + b_hh
            pl.BlockSpec((HP, HIDP), lambda b: (0, 0)),                 # W1 (bf16)
            pl.BlockSpec((1, HIDP), lambda b: (0, 0)),                  # b1
            pl.BlockSpec((HIDP, NCP), lambda b: (0, 0)),                # W2 (bf16)
            pl.BlockSpec((1, NCP), lambda b: (0, 0)),                   # b2 (pad=-1e30)
            pl.BlockSpec((pl.Squeezed(), 1, 1), lambda b: (b, 0, 0)),   # idx
        ],
        out_specs=pl.BlockSpec((pl.Squeezed(), 1, NCP), lambda b: (b, 0, 0)),
        scratch_shapes=[pltpu.VMEM((T_c, HP4), jnp.float32)],
        compiler_params=pltpu.CompilerParams(
            dimension_semantics=("parallel",),          # batch across TCs (v7x)
            vmem_limit_bytes=32 * 1024 * 1024,
        ),
    )(
        x,
        jnp.asarray(wconv.reshape(C * K, 1, 1), jnp.float32),
        jnp.asarray(bconv.reshape(C, 1, 1), jnp.float32),
        jnp.asarray(wih_pack, jnp.bfloat16),
        jnp.asarray(whh_pack, jnp.bfloat16),
        jnp.asarray(b_pack, jnp.float32),
        jnp.asarray(w1_pack, jnp.bfloat16),
        jnp.asarray(b1_pack, jnp.float32),
        jnp.asarray(w2_pack, jnp.bfloat16),
        jnp.asarray(b2_pack, jnp.float32),
        jnp.asarray(idx.reshape(B, 1, 1), jnp.int32),
    )
    return out[:, 0, :NC]


def _reference_forward(x, lengths, params, kernel_size):
    """Pure-JAX float32 re-implementation of CNN_LSTMModel.forward (the spec)."""
    wconv, bconv = params["wconv"], params["bconv"]
    Wih, Whh, bih, bhh = params["Wih"], params["Whh"], params["bih"], params["bhh"]
    W1, b1, W2, b2 = params["W1"], params["b1"], params["W2"], params["b2"]
    B, T, F = x.shape
    C, K = wconv.shape
    H = Whh.shape[1]
    T_c = T - K + 1

    # Conv2d(1, C, (K, 1)) valid -> (B, C, T_c, F); permute+reshape -> (B, T_c, C*F)
    z = jnp.stack(
        [sum(wconv[c, k] * x[:, k:k + T_c, :] for k in range(K)) + bconv[c]
         for c in range(C)], axis=1)
    z = jnp.transpose(z, (0, 2, 1, 3)).reshape(B, T_c, C * F)

    h = jnp.zeros((B, H), jnp.float32)
    c = jnp.zeros((B, H), jnp.float32)
    hs = []
    for t in range(T_c):
        g = z[:, t, :] @ Wih.T + h @ Whh.T + bih + bhh
        i = jax.nn.sigmoid(g[:, 0 * H:1 * H])
        f = jax.nn.sigmoid(g[:, 1 * H:2 * H])
        gg = jnp.tanh(g[:, 2 * H:3 * H])
        o = jax.nn.sigmoid(g[:, 3 * H:4 * H])
        c = f * c + i * gg
        h = o * jnp.tanh(c)
        hs.append(h)
    hs = jnp.stack(hs, axis=1)                               # (B, T_c, H)

    idx = lengths.astype(jnp.int32) - kernel_size - 1        # (lengths-1-K+1) - 1
    h_sel = hs[jnp.arange(B), idx]

    hid = jnp.maximum(h_sel @ W1.T + b1, 0.0)
    logits = hid @ W2.T + b2
    return jax.nn.softmax(logits, axis=-1)


if __name__ == "__main__":
    key = jax.random.PRNGKey(0)
    B, T, F = 2, 16, 16          # batch x time x input_size
    K, C = 3, 2                  # kernel_size, num_channels
    H, HID, NC = 100, 128, 4     # lstm_dim, hidden_dim, num_classes
    D = C * F

    ks = jax.random.split(key, 11)
    x = jax.random.normal(ks[0], (B, T, F), jnp.float32)
    lengths = jnp.array([16, 12], dtype=jnp.int32)

    params = {
        "wconv": jax.random.normal(ks[1], (C, K), jnp.float32) / np.sqrt(K),
        "bconv": 0.1 * jax.random.normal(ks[2], (C,), jnp.float32),
        "Wih": jax.random.normal(ks[3], (4 * H, D), jnp.float32) / np.sqrt(D),
        "Whh": jax.random.normal(ks[4], (4 * H, H), jnp.float32) / np.sqrt(H),
        "bih": 0.1 * jax.random.normal(ks[5], (4 * H,), jnp.float32),
        "bhh": 0.1 * jax.random.normal(ks[6], (4 * H,), jnp.float32),
        "W1": jax.random.normal(ks[7], (HID, H), jnp.float32) / np.sqrt(H),
        "b1": 0.1 * jax.random.normal(ks[8], (HID,), jnp.float32),
        "W2": jax.random.normal(ks[9], (NC, HID), jnp.float32) / np.sqrt(HID),
        "b2": 0.1 * jax.random.normal(ks[10], (NC,), jnp.float32),
    }

    out = cnn_lstm_forward(x, lengths, params, kernel_size=K)
    out = jax.block_until_ready(out)

    ref = jax.block_until_ready(_reference_forward(x, lengths, params, K))

    assert out.shape == (B, NC), out.shape
    np.testing.assert_allclose(np.asarray(out), np.asarray(ref), atol=2e-2, rtol=0)
    np.testing.assert_allclose(np.asarray(out).sum(-1), np.ones(B), atol=1e-3)
    print("KERNEL_OK")
</pallas_src>

<mosaic_0001>
module attributes {stable_mosaic.version = 11 : i64} {
  func.func @_cnn_lstm_kernel(%arg0: i32, %arg1: memref<1x16x16xf32, #tpu.memory_space<vmem>>, %arg2: memref<6x1x1xf32, #tpu.memory_space<vmem>>, %arg3: memref<2x1x1xf32, #tpu.memory_space<vmem>>, %arg4: memref<2x16x512xbf16, #tpu.memory_space<vmem>>, %arg5: memref<128x512xbf16, #tpu.memory_space<vmem>>, %arg6: memref<1x512xf32, #tpu.memory_space<vmem>>, %arg7: memref<128x128xbf16, #tpu.memory_space<vmem>>, %arg8: memref<1x128xf32, #tpu.memory_space<vmem>>, %arg9: memref<128x128xbf16, #tpu.memory_space<vmem>>, %arg10: memref<1x128xf32, #tpu.memory_space<vmem>>, %arg11: memref<1x1x1xi32, #tpu.memory_space<vmem>>, %arg12: memref<1x1x128xf32, #tpu.memory_space<vmem>>, %arg13: memref<14x512xf32, #tpu.memory_space<vmem>>) attributes {dimension_semantics = [#tpu.dimension_semantics<parallel>], iteration_bounds = array<i64: 2>, scalar_prefetch = 0 : i64, scratch_operands = 1 : i64, tpu.core_type = #tpu.core_type<tc>, window_params = [{transform_indices = @transform_0, window_bounds = array<i64: 1, 16, 16>}, {pipeline_mode = #tpu.pipeline_mode<synchronous>, transform_indices = @transform_1, window_bounds = array<i64: 6, 1, 1>}, {pipeline_mode = #tpu.pipeline_mode<synchronous>, transform_indices = @transform_2, window_bounds = array<i64: 2, 1, 1>}, {pipeline_mode = #tpu.pipeline_mode<synchronous>, transform_indices = @transform_3, window_bounds = array<i64: 2, 16, 512>}, {pipeline_mode = #tpu.pipeline_mode<synchronous>, transform_indices = @transform_4, window_bounds = array<i64: 128, 512>}, {pipeline_mode = #tpu.pipeline_mode<synchronous>, transform_indices = @transform_5, window_bounds = array<i64: 1, 512>}, {pipeline_mode = #tpu.pipeline_mode<synchronous>, transform_indices = @transform_6, window_bounds = array<i64: 128, 128>}, {pipeline_mode = #tpu.pipeline_mode<synchronous>, transform_indices = @transform_7, window_bounds = array<i64: 1, 128>}, {pipeline_mode = #tpu.pipeline_mode<synchronous>, transform_indices = @transform_8, window_bounds = array<i64: 128, 128>}, {pipeline_mode = #tpu.pipeline_mode<synchronous>, transform_indices = @transform_9, window_bounds = array<i64: 1, 128>}, {transform_indices = @transform_10, window_bounds = array<i64: 1, 1, 1>}, {transform_indices = @transform_11, window_bounds = array<i64: 1, 1, 128>}]} {
    %c0 = arith.constant 0 : index
    %c0_0 = arith.constant 0 : index
    %c0_1 = arith.constant 0 : index
    %0 = vector.load %arg1[%c0, %c0_0, %c0_1] : memref<1x16x16xf32, #tpu.memory_space<vmem>>, vector<1x16x16xf32>
    %1 = vector.shape_cast %0 : vector<1x16x16xf32> to vector<16x16xf32>
    %cst = arith.constant 0.000000e+00 : f32
    %2 = vector.broadcast %cst : f32 to vector<14x512xf32>
    %cst_2 = arith.constant 0.000000e+00 : f32
    %3 = vector.broadcast %cst_2 : f32 to vector<14x16xf32>
    %c0_3 = arith.constant 0 : index
    %c0_4 = arith.constant 0 : index
    %c0_5 = arith.constant 0 : index
    %4 = vector.load %arg3[%c0_3, %c0_4, %c0_5] : memref<2x1x1xf32, #tpu.memory_space<vmem>>, vector<1x1x1xf32>
    %5 = vector.shape_cast %4 : vector<1x1x1xf32> to vector<1x1xf32>
    %6 = vector.broadcast %5 : vector<1x1xf32> to vector<14x16xf32>
    %7 = arith.addf %3, %6 : vector<14x16xf32>
    %c0_6 = arith.constant 0 : index
    %c0_7 = arith.constant 0 : index
    %c0_8 = arith.constant 0 : index
    %8 = vector.load %arg2[%c0_6, %c0_7, %c0_8] : memref<6x1x1xf32, #tpu.memory_space<vmem>>, vector<1x1x1xf32>
    %9 = vector.shape_cast %8 : vector<1x1x1xf32> to vector<1x1xf32>
    %10 = vector.extract_strided_slice %1 {offsets = [0, 0], sizes = [14, 16], strides = [1, 1]} : vector<16x16xf32> to vector<14x16xf32>
    %11 = vector.broadcast %9 : vector<1x1xf32> to vector<14x16xf32>
    %12 = arith.mulf %11, %10 : vector<14x16xf32>
    %13 = arith.addf %7, %12 : vector<14x16xf32>
    %c1 = arith.constant 1 : index
    %c0_9 = arith.constant 0 : index
    %c0_10 = arith.constant 0 : index
    %14 = vector.load %arg2[%c1, %c0_9, %c0_10] : memref<6x1x1xf32, #tpu.memory_space<vmem>>, vector<1x1x1xf32>
    %15 = vector.shape_cast %14 : vector<1x1x1xf32> to vector<1x1xf32>
    %16 = vector.extract_strided_slice %1 {offsets = [1, 0], sizes = [14, 16], strides = [1, 1]} : vector<16x16xf32> to vector<14x16xf32>
    %17 = vector.broadcast %15 : vector<1x1xf32> to vector<14x16xf32>
    %18 = arith.mulf %17, %16 : vector<14x16xf32>
    %19 = arith.addf %13, %18 : vector<14x16xf32>
    %c2 = arith.constant 2 : index
    %c0_11 = arith.constant 0 : index
    %c0_12 = arith.constant 0 : index
    %20 = vector.load %arg2[%c2, %c0_11, %c0_12] : memref<6x1x1xf32, #tpu.memory_space<vmem>>, vector<1x1x1xf32>
    %21 = vector.shape_cast %20 : vector<1x1x1xf32> to vector<1x1xf32>
    %22 = vector.extract_strided_slice %1 {offsets = [2, 0], sizes = [14, 16], strides = [1, 1]} : vector<16x16xf32> to vector<14x16xf32>
    %23 = vector.broadcast %21 : vector<1x1xf32> to vector<14x16xf32>
    %24 = arith.mulf %23, %22 : vector<14x16xf32>
    %25 = arith.addf %19, %24 : vector<14x16xf32>
    %26 = arith.truncf %25 : vector<14x16xf32> to vector<14x16xbf16>
    %c0_13 = arith.constant 0 : index
    %c0_14 = arith.constant 0 : index
    %c0_15 = arith.constant 0 : index
    %27 = vector.load %arg4[%c0_13, %c0_14, %c0_15] : memref<2x16x512xbf16, #tpu.memory_space<vmem>>, vector<1x16x512xbf16>
    %28 = vector.shape_cast %27 : vector<1x16x512xbf16> to vector<16x512xbf16>
    %cst_16 = arith.constant dense<0.000000e+00> : vector<14x512xf32>
    %29 = tpu.matmul %26, %28, %cst_16 {dimension_numbers = #tpu.dot_dimension_numbers<[1], [0], [0], [1], [0, 0, 1, 1], [], []>} : vector<14x16xbf16>, vector<16x512xbf16>, vector<14x512xf32> -> vector<14x512xf32>
    %30 = arith.addf %2, %29 : vector<14x512xf32>
    %cst_17 = arith.constant 0.000000e+00 : f32
    %31 = vector.broadcast %cst_17 : f32 to vector<14x16xf32>
    %c1_18 = arith.constant 1 : index
    %c0_19 = arith.constant 0 : index
    %c0_20 = arith.constant 0 : index
    %32 = vector.load %arg3[%c1_18, %c0_19, %c0_20] : memref<2x1x1xf32, #tpu.memory_space<vmem>>, vector<1x1x1xf32>
    %33 = vector.shape_cast %32 : vector<1x1x1xf32> to vector<1x1xf32>
    %34 = vector.broadcast %33 : vector<1x1xf32> to vector<14x16xf32>
    %35 = arith.addf %31, %34 : vector<14x16xf32>
    %c3 = arith.constant 3 : index
    %c0_21 = arith.constant 0 : index
    %c0_22 = arith.constant 0 : index
    %36 = vector.load %arg2[%c3, %c0_21, %c0_22] : memref<6x1x1xf32, #tpu.memory_space<vmem>>, vector<1x1x1xf32>
    %37 = vector.shape_cast %36 : vector<1x1x1xf32> to vector<1x1xf32>
    %38 = vector.extract_strided_slice %1 {offsets = [0, 0], sizes = [14, 16], strides = [1, 1]} : vector<16x16xf32> to vector<14x16xf32>
    %39 = vector.broadcast %37 : vector<1x1xf32> to vector<14x16xf32>
    %40 = arith.mulf %39, %38 : vector<14x16xf32>
    %41 = arith.addf %35, %40 : vector<14x16xf32>
    %c4 = arith.constant 4 : index
    %c0_23 = arith.constant 0 : index
    %c0_24 = arith.constant 0 : index
    %42 = vector.load %arg2[%c4, %c0_23, %c0_24] : memref<6x1x1xf32, #tpu.memory_space<vmem>>, vector<1x1x1xf32>
    %43 = vector.shape_cast %42 : vector<1x1x1xf32> to vector<1x1xf32>
    %44 = vector.extract_strided_slice %1 {offsets = [1, 0], sizes = [14, 16], strides = [1, 1]} : vector<16x16xf32> to vector<14x16xf32>
    %45 = vector.broadcast %43 : vector<1x1xf32> to vector<14x16xf32>
    %46 = arith.mulf %45, %44 : vector<14x16xf32>
    %47 = arith.addf %41, %46 : vector<14x16xf32>
    %c5 = arith.constant 5 : index
    %c0_25 = arith.constant 0 : index
    %c0_26 = arith.constant 0 : index
    %48 = vector.load %arg2[%c5, %c0_25, %c0_26] : memref<6x1x1xf32, #tpu.memory_space<vmem>>, vector<1x1x1xf32>
    %49 = vector.shape_cast %48 : vector<1x1x1xf32> to vector<1x1xf32>
    %50 = vector.extract_strided_slice %1 {offsets = [2, 0], sizes = [14, 16], strides = [1, 1]} : vector<16x16xf32> to vector<14x16xf32>
    %51 = vector.broadcast %49 : vector<1x1xf32> to vector<14x16xf32>
    %52 = arith.mulf %51, %50 : vector<14x16xf32>
    %53 = arith.addf %47, %52 : vector<14x16xf32>
    %54 = arith.truncf %53 : vector<14x16xf32> to vector<14x16xbf16>
    %c1_27 = arith.constant 1 : index
    %c0_28 = arith.constant 0 : index
    %c0_29 = arith.constant 0 : index
    %55 = vector.load %arg4[%c1_27, %c0_28, %c0_29] : memref<2x16x512xbf16, #tpu.memory_space<vmem>>, vector<1x16x512xbf16>
    %56 = vector.shape_cast %55 : vector<1x16x512xbf16> to vector<16x512xbf16>
    %cst_30 = arith.constant dense<0.000000e+00> : vector<14x512xf32>
    %57 = tpu.matmul %54, %56, %cst_30 {dimension_numbers = #tpu.dot_dimension_numbers<[1], [0], [0], [1], [0, 0, 1, 1], [], []>} : vector<14x16xbf16>, vector<16x512xbf16>, vector<14x512xf32> -> vector<14x512xf32>
    %58 = arith.addf %30, %57 : vector<14x512xf32>
    %c0_31 = arith.constant 0 : index
    %c0_32 = arith.constant 0 : index
    %59 = vector.load %arg6[%c0_31, %c0_32] : memref<1x512xf32, #tpu.memory_space<vmem>>, vector<1x512xf32>
    %60 = vector.broadcast %59 : vector<1x512xf32> to vector<14x512xf32>
    %61 = arith.addf %58, %60 : vector<14x512xf32>
    %c0_33 = arith.constant 0 : index
    %c0_34 = arith.constant 0 : index
    %62 = vector.load %arg13[%c0_33, %c0_34] : memref<14x512xf32, #tpu.memory_space<vmem>>, vector<14x512xf32>
    tpu.vector_store %arg13[%c0_33, %c0_34], %61 {strides = array<i32>} : memref<14x512xf32, #tpu.memory_space<vmem>>, vector<14x512xf32>,
    %c0_35 = arith.constant 0 : index
    %c0_36 = arith.constant 0 : index
    %63 = vector.load %arg5[%c0_35, %c0_36] : memref<128x512xbf16, #tpu.memory_space<vmem>>, vector<128x512xbf16>
    %c0_37 = arith.constant 0 : index
    %c0_38 = arith.constant 0 : index
    %c0_39 = arith.constant 0 : index
    %64 = vector.load %arg11[%c0_37, %c0_38, %c0_39] : memref<1x1x1xi32, #tpu.memory_space<vmem>>, vector<1x1x1xi32>
    %65 = vector.shape_cast %64 : vector<1x1x1xi32> to vector<1x1xi32>
    %cst_40 = arith.constant 0.000000e+00 : f32
    %66 = vector.broadcast %cst_40 : f32 to vector<1x128xf32>
    %c0_i32 = arith.constant 0 : i32
    %c14_i32 = arith.constant 14 : i32
    %67 = arith.addi %c0_i32, %c14_i32 : i32
    %c1_i32 = arith.constant 1 : i32
    %68:3 = scf.for %arg14 = %c0_i32 to %67 step %c1_i32 iter_args(%arg15 = %66, %arg16 = %66, %arg17 = %66) -> (vector<1x128xf32>, vector<1x128xf32>, vector<1x128xf32>)  : i32 {
      %93 = arith.index_cast %arg14 : i32 to index
      %c0_58 = arith.constant 0 : index
      %94 = vector.load %arg13[%93, %c0_58] : memref<14x512xf32, #tpu.memory_space<vmem>>, vector<1x512xf32>
      %95 = arith.truncf %arg15 : vector<1x128xf32> to vector<1x128xbf16>
      %cst_59 = arith.constant dense<0.000000e+00> : vector<1x512xf32>
      %96 = tpu.matmul %95, %63, %cst_59 {dimension_numbers = #tpu.dot_dimension_numbers<[1], [0], [0], [1], [0, 0, 1, 1], [], []>} : vector<1x128xbf16>, vector<128x512xbf16>, vector<1x512xf32> -> vector<1x512xf32>
      %97 = arith.addf %94, %96 : vector<1x512xf32>
      %98 = vector.extract_strided_slice %97 {offsets = [0, 0], sizes = [1, 128], strides = [1, 1]} : vector<1x512xf32> to vector<1x128xf32>
      %cst_60 = arith.constant 5.000000e-01 : f32
      %99 = vector.broadcast %cst_60 : f32 to vector<1x128xf32>
      %100 = arith.mulf %99, %98 : vector<1x128xf32>
      %101 = math.tanh %100 : vector<1x128xf32>
      %cst_61 = arith.constant 1.000000e+00 : f32
      %102 = vector.broadcast %cst_61 : f32 to vector<1x128xf32>
      %103 = arith.addf %101, %102 : vector<1x128xf32>
      %cst_62 = arith.constant 5.000000e-01 : f32
      %104 = vector.broadcast %cst_62 : f32 to vector<1x128xf32>
      %105 = arith.mulf %104, %103 : vector<1x128xf32>
      %106 = vector.extract_strided_slice %97 {offsets = [0, 128], sizes = [1, 128], strides = [1, 1]} : vector<1x512xf32> to vector<1x128xf32>
      %cst_63 = arith.constant 5.000000e-01 : f32
      %107 = vector.broadcast %cst_63 : f32 to vector<1x128xf32>
      %108 = arith.mulf %107, %106 : vector<1x128xf32>
      %109 = math.tanh %108 : vector<1x128xf32>
      %cst_64 = arith.constant 1.000000e+00 : f32
      %110 = vector.broadcast %cst_64 : f32 to vector<1x128xf32>
      %111 = arith.addf %109, %110 : vector<1x128xf32>
      %cst_65 = arith.constant 5.000000e-01 : f32
      %112 = vector.broadcast %cst_65 : f32 to vector<1x128xf32>
      %113 = arith.mulf %112, %111 : vector<1x128xf32>
      %114 = vector.extract_strided_slice %97 {offsets = [0, 256], sizes = [1, 128], strides = [1, 1]} : vector<1x512xf32> to vector<1x128xf32>
      %115 = math.tanh %114 : vector<1x128xf32>
      %116 = vector.extract_strided_slice %97 {offsets = [0, 384], sizes = [1, 128], strides = [1, 1]} : vector<1x512xf32> to vector<1x128xf32>
      %cst_66 = arith.constant 5.000000e-01 : f32
      %117 = vector.broadcast %cst_66 : f32 to vector<1x128xf32>
      %118 = arith.mulf %117, %116 : vector<1x128xf32>
      %119 = math.tanh %118 : vector<1x128xf32>
      %cst_67 = arith.constant 1.000000e+00 : f32
      %120 = vector.broadcast %cst_67 : f32 to vector<1x128xf32>
      %121 = arith.addf %119, %120 : vector<1x128xf32>
      %cst_68 = arith.constant 5.000000e-01 : f32
      %122 = vector.broadcast %cst_68 : f32 to vector<1x128xf32>
      %123 = arith.mulf %122, %121 : vector<1x128xf32>
      %124 = arith.mulf %113, %arg16 : vector<1x128xf32>
      %125 = arith.mulf %105, %115 : vector<1x128xf32>
      %126 = arith.addf %124, %125 : vector<1x128xf32>
      %127 = math.tanh %126 : vector<1x128xf32>
      %128 = arith.mulf %123, %127 : vector<1x128xf32>
      %129 = vector.broadcast %arg14 : i32 to vector<1x1xi32>
      %130 = arith.cmpi eq, %65, %129 : vector<1x1xi32>
      %131 = vector.shape_cast %130 : vector<1x1xi1> to vector<1x1xi1>
      %132 = vector.broadcast %131 : vector<1x1xi1> to vector<1x128xi1>
      %133 = arith.select %132, %128, %arg17 : vector<1x128xi1>, vector<1x128xf32>
      scf.yield %128, %126, %133 : vector<1x128xf32>, vector<1x128xf32>, vector<1x128xf32>
    }
    %c14_i32_41 = arith.constant 14 : i32
    %69 = arith.truncf %68#2 : vector<1x128xf32> to vector<1x128xbf16>
    %c0_42 = arith.constant 0 : index
    %c0_43 = arith.constant 0 : index
    %70 = vector.load %arg7[%c0_42, %c0_43] : memref<128x128xbf16, #tpu.memory_space<vmem>>, vector<128x128xbf16>
    %cst_44 = arith.constant dense<0.000000e+00> : vector<1x128xf32>
    %71 = tpu.matmul %69, %70, %cst_44 {dimension_numbers = #tpu.dot_dimension_numbers<[1], [0], [0], [1], [0, 0, 1, 1], [], []>} : vector<1x128xbf16>, vector<128x128xbf16>, vector<1x128xf32> -> vector<1x128xf32>
    %c0_45 = arith.constant 0 : index
    %c0_46 = arith.constant 0 : index
    %72 = vector.load %arg8[%c0_45, %c0_46] : memref<1x128xf32, #tpu.memory_space<vmem>>, vector<1x128xf32>
    %73 = arith.addf %71, %72 : vector<1x128xf32>
    %cst_47 = arith.constant 0.000000e+00 : f32
    %74 = vector.broadcast %cst_47 : f32 to vector<1x128xf32>
    %75 = arith.maximumf %73, %74 : vector<1x128xf32>
    %76 = arith.truncf %75 : vector<1x128xf32> to vector<1x128xbf16>
    %c0_48 = arith.constant 0 : index
    %c0_49 = arith.constant 0 : index
    %77 = vector.load %arg9[%c0_48, %c0_49] : memref<128x128xbf16, #tpu.memory_space<vmem>>, vector<128x128xbf16>
    %cst_50 = arith.constant dense<0.000000e+00> : vector<1x128xf32>
    %78 = tpu.matmul %76, %77, %cst_50 {dimension_numbers = #tpu.dot_dimension_numbers<[1], [0], [0], [1], [0, 0, 1, 1], [], []>} : vector<1x128xbf16>, vector<128x128xbf16>, vector<1x128xf32> -> vector<1x128xf32>
    %c0_51 = arith.constant 0 : index
    %c0_52 = arith.constant 0 : index
    %79 = vector.load %arg10[%c0_51, %c0_52] : memref<1x128xf32, #tpu.memory_space<vmem>>, vector<1x128xf32>
    %80 = arith.addf %78, %79 : vector<1x128xf32>
    %cst_53 = arith.constant dense<0xFF800000> : vector<1xf32>
    %81 = vector.multi_reduction <maximumf>, %80, %cst_53 [1] : vector<1x128xf32> to vector<1xf32>
    %82 = vector.shape_cast %81 : vector<1xf32> to vector<1x1xf32>
    %83 = vector.broadcast %82 : vector<1x1xf32> to vector<1x128xf32>
    %84 = arith.subf %80, %83 : vector<1x128xf32>
    %85 = math.exp %84 : vector<1x128xf32>
    %cst_54 = arith.constant dense<0.000000e+00> : vector<1xf32>
    %86 = vector.multi_reduction <add>, %85, %cst_54 [1] : vector<1x128xf32> to vector<1xf32>
    %87 = vector.shape_cast %86 : vector<1xf32> to vector<1x1xf32>
    %88 = vector.broadcast %87 : vector<1x1xf32> to vector<1x128xf32>
    %89 = arith.divf %85, %88 : vector<1x128xf32>
    %c0_55 = arith.constant 0 : index
    %c0_56 = arith.constant 0 : index
    %c0_57 = arith.constant 0 : index
    %90 = vector.load %arg12[%c0_55, %c0_56, %c0_57] : memref<1x1x128xf32, #tpu.memory_space<vmem>>, vector<1x1x128xf32>
    %91 = vector.shape_cast %90 : vector<1x1x128xf32> to vector<1x128xf32>
    %92 = vector.shape_cast %89 : vector<1x128xf32> to vector<1x1x128xf32>
    tpu.vector_store %arg12[%c0_55, %c0_56, %c0_57], %92 {strides = array<i32>} : memref<1x1x128xf32, #tpu.memory_space<vmem>>, vector<1x1x128xf32>,
    return
  }
  func.func @transform_0(%arg0: i32) -> (i32, i32, i32) {
    %c0_i32 = arith.constant 0 : i32
    %c0_i32_0 = arith.constant 0 : i32
    %c0_i32_1 = arith.constant 0 : i32
    return %arg0, %c0_i32, %c0_i32_0 : i32, i32, i32
  }
  func.func @transform_1(%arg0: i32) -> (i32, i32, i32) {
    %c0_i32 = arith.constant 0 : i32
    %c0_i32_0 = arith.constant 0 : i32
    %c0_i32_1 = arith.constant 0 : i32
    %c0_i32_2 = arith.constant 0 : i32
    return %c0_i32, %c0_i32_0, %c0_i32_1 : i32, i32, i32
  }
  func.func @transform_2(%arg0: i32) -> (i32, i32, i32) {
    %c0_i32 = arith.constant 0 : i32
    %c0_i32_0 = arith.constant 0 : i32
    %c0_i32_1 = arith.constant 0 : i32
    %c0_i32_2 = arith.constant 0 : i32
    return %c0_i32, %c0_i32_0, %c0_i32_1 : i32, i32, i32
  }
  func.func @transform_3(%arg0: i32) -> (i32, i32, i32) {
    %c0_i32 = arith.constant 0 : i32
    %c0_i32_0 = arith.constant 0 : i32
    %c0_i32_1 = arith.constant 0 : i32
    %c0_i32_2 = arith.constant 0 : i32
    return %c0_i32, %c0_i32_0, %c0_i32_1 : i32, i32, i32
  }
  func.func @transform_4(%arg0: i32) -> (i32, i32) {
    %c0_i32 = arith.constant 0 : i32
    %c0_i32_0 = arith.constant 0 : i32
    %c0_i32_1 = arith.constant 0 : i32
    return %c0_i32, %c0_i32_0 : i32, i32
  }
  func.func @transform_5(%arg0: i32) -> (i32, i32) {
    %c0_i32 = arith.constant 0 : i32
    %c0_i32_0 = arith.constant 0 : i32
    %c0_i32_1 = arith.constant 0 : i32
    return %c0_i32, %c0_i32_0 : i32, i32
  }
  func.func @transform_6(%arg0: i32) -> (i32, i32) {
    %c0_i32 = arith.constant 0 : i32
    %c0_i32_0 = arith.constant 0 : i32
    %c0_i32_1 = arith.constant 0 : i32
    return %c0_i32, %c0_i32_0 : i32, i32
  }
  func.func @transform_7(%arg0: i32) -> (i32, i32) {
    %c0_i32 = arith.constant 0 : i32
    %c0_i32_0 = arith.constant 0 : i32
    %c0_i32_1 = arith.constant 0 : i32
    return %c0_i32, %c0_i32_0 : i32, i32
  }
  func.func @transform_8(%arg0: i32) -> (i32, i32) {
    %c0_i32 = arith.constant 0 : i32
    %c0_i32_0 = arith.constant 0 : i32
    %c0_i32_1 = arith.constant 0 : i32
    return %c0_i32, %c0_i32_0 : i32, i32
  }
  func.func @transform_9(%arg0: i32) -> (i32, i32) {
    %c0_i32 = arith.constant 0 : i32
    %c0_i32_0 = arith.constant 0 : i32
    %c0_i32_1 = arith.constant 0 : i32
    return %c0_i32, %c0_i32_0 : i32, i32
  }
  func.func @transform_10(%arg0: i32) -> (i32, i32, i32) {
    %c0_i32 = arith.constant 0 : i32
    %c0_i32_0 = arith.constant 0 : i32
    %c0_i32_1 = arith.constant 0 : i32
    return %arg0, %c0_i32, %c0_i32_0 : i32, i32, i32
  }
  func.func @transform_11(%arg0: i32) -> (i32, i32, i32) {
    %c0_i32 = arith.constant 0 : i32
    %c0_i32_0 = arith.constant 0 : i32
    %c0_i32_1 = arith.constant 0 : i32
    return %arg0, %c0_i32, %c0_i32_0 : i32, i32, i32
  }
}

</mosaic_0001>

<llo_original>
// kernel: tpu_custom_call.1
$region0: #{tpu_custom_call.1}
  #allocation0 [shape = 'u32[]', space=smem, size = 0x4, offset = 0x4, fixed_abs, tag = 'smem constant byte address 0x4 - core index']
  #allocation1 [shape = 'u32[144,128]{1,0:T(1,128)}', space=vmem, size = 0x12000, scoped, tag = 'internal scratch']
  #allocation2 [shape = 'f32[14,512]{1,0:T(8,128)}', space=vmem, size = 0x8000, scoped, tag = 'scratch operand']
  %s0 = inlined_call_operand.hbm [shape: f32[2,16,16], index: 0, kind: input, shape index: {}]
  %s1 = inlined_call_operand.vmem [shape: f32[6,1,1], index: 1, kind: input, shape index: {}]
  %s2 = inlined_call_operand.vmem [shape: f32[2,1,1], index: 2, kind: input, shape index: {}]
  %s3 = inlined_call_operand.hbm [shape: bf16[2,16,512], index: 3, kind: input, shape index: {}]
  %s4 = inlined_call_operand.hbm [shape: bf16[128,512], index: 4, kind: input, shape index: {}]
  %s5 = inlined_call_operand.vmem [shape: f32[1,512], index: 5, kind: input, shape index: {}]
  %s6 = inlined_call_operand.hbm [shape: bf16[128,128], index: 6, kind: input, shape index: {}]
  %s7 = inlined_call_operand.vmem [shape: f32[1,128], index: 7, kind: input, shape index: {}]
  %s8 = inlined_call_operand.hbm [shape: bf16[128,128], index: 8, kind: input, shape index: {}]
  %s9 = inlined_call_operand.vmem [shape: f32[1,128], index: 9, kind: input, shape index: {}]
  %s10 = inlined_call_operand.vmem [shape: s32[2,1,1], index: 10, kind: input, shape index: {}]
  %s11 = inlined_call_operand.hbm [shape: f32[2,1,128], index: 11, kind: output, shape index: {}]
  %s12 = sld [smem:[#allocation0]]
  $region104: #{tpu_custom_call.1} parent=0
    _
  %s14 = ssub.s32 1, %s12
  %s15 = scalar_select 0, %s14, %s12
  $region1: #{tpu_custom_call.1} parent=0
    #allocation3 [shape = 'u8[16384]{0}', space=vmem, size = 0x4000, scoped, tag = 'input window, operand 0']
    #allocation4 [shape = 's32[2]{0}', space=sflag, size = 0x8, scoped, tag = 'scoped memory for tpu_custom_call.1']
    #allocation5 [shape = 's32[2]{0}', space=sflag, size = 0x8, scoped, tag = 'scoped memory for tpu_custom_call.1']
    #allocation6 [shape = 'u8[32768]{0}', space=vmem, size = 0x8000, scoped, tag = 'input window, operand 3, single buffered']
    #allocation7 [shape = 's32[1]{0}', space=sflag, size = 0x4, scoped, tag = 'scoped memory for tpu_custom_call.1']
    #allocation8 [shape = 'u8[131072]{0}', space=vmem, size = 0x20000, scoped, tag = 'input window, operand 4, single buffered']
    #allocation9 [shape = 'u8[32768]{0}', space=vmem, size = 0x8000, scoped, tag = 'input window, operand 6, single buffered']
    #allocation10 [shape = 's32[1]{0}', space=sflag, size = 0x4, scoped, tag = 'scoped memory for tpu_custom_call.1']
    #allocation11 [shape = 'u8[32768]{0}', space=vmem, size = 0x8000, scoped, tag = 'input window, operand 8, single buffered']
    #allocation12 [shape = 'u8[1024]{0}', space=vmem, size = 0x400, scoped, tag = 'output window, operand 0']
    %16 = vsyncpa [#allocation4], 0
    %s17 = scalar_lea.sflag [#allocation4], 1
    %18 = vsyncpa %s17, 0
    %19 = vsyncpa [#allocation7], 0
    %20 = vsyncpa [#allocation10], 0
    %21 = vsyncpa [#allocation5], 0
    %s22 = scalar_lea.sflag [#allocation5], 1
    %23 = vsyncpa %s22, 0
    loop: start=0, step=1, limit=4
    $region2: #{tpu_custom_call.1} parent=1 // loop_pre_header
      _
    $region3: #{tpu_custom_call.1} parent=1 // loop_header
      %s25 = sphi 0, %s29
      %p26 = scmp.ge.s32.totalorder %s25, 4
      %s35 = sphi 0, %s37
      %s38 = sphi 0, %s35
      %s39 = sphi 0, %s38
      %s55 = sphi 0, %s39
      %s59 = sphi 0, %s59
      %s61 = sphi 0, %s59
      %s62 = sphi 0, %s61
      %s76 = sphi 0, %s62
      %s80 = sphi 0, %s80
      %s82 = sphi 0, %s80
      %s83 = sphi 0, %s82
      %s97 = sphi 0, %s83
      %s101 = sphi 0, %s101
      %s103 = sphi 0, %s101
      %s104 = sphi 0, %s103
      %s118 = sphi 0, %s104
      %s122 = sphi 0, %s122
      %s124 = sphi 0, %s122
      %s125 = sphi 0, %s124
      %s139 = sphi 0, %s125
      %s143 = sphi 0, %s143
      %s145 = sphi 0, %s143
      %s146 = sphi 0, %s145
      %s160 = sphi 0, %s146
      %s164 = sphi 0, %s164
      %s166 = sphi 0, %s164
      %s167 = sphi 0, %s166
      %s181 = sphi 0, %s167
      %s185 = sphi 0, %s185
      %s187 = sphi 0, %s185
      %s188 = sphi 0, %s187
      %s202 = sphi 0, %s188
      %s206 = sphi 0, %s206
      %s208 = sphi 0, %s206
      %s209 = sphi 0, %s208
      %s223 = sphi 0, %s209
      %s227 = sphi 0, %s227
      %s229 = sphi 0, %s227
      %s230 = sphi 0, %s229
      %s244 = sphi 0, %s230
      %s250 = sphi 0, %s252
      %s253 = sphi 0, %s250
      %s254 = sphi 0, %s253
      %s270 = sphi 0, %s254
      %s276 = sphi 0, %s278
      %s279 = sphi 0, %s276
      %s280 = sphi 0, %s279
      %s296 = sphi 0, %s280
    $region4: #{tpu_custom_call.1} parent=1 // loop_header_branch
      %28 = sbr.rel (%p26) target = $region8
    $region5: #{tpu_custom_call.1} parent=1 // loop_body
      %s30 = ssub.s32 %s25, 1
      %s31 = ssub.s32 %s25, 2
      %s32 = sadd.s32 %s25, 1
      %s33 = ssub.s32 %s25, %s32
      %p34 = scmp.eq.s32.totalorder %s33, 0
      %s36 = sadd.s32 %s35, 1
      %s37 = scalar_select %p34, %s35, %s36
      %p40 = pneg %p34
      %p41 = scmp.eq.s32.totalorder %s25, 1
      %p42 = por %p40, %p41
      %p43 = scmp.ne.s32.totalorder %s35, %s38
      %p44 = scmp.eq.s32.totalorder %s25, 0
      %p45 = por %p43, %p44
      %p46 = scmp.ne.s32.totalorder %s35, %s38
      %p47 = scmp.eq.s32.totalorder %s30, 1
      %p48 = por %p46, %p47
      %p49 = scmp.ne.s32.totalorder %s38, %s39
      %p50 = scmp.eq.s32.totalorder %s30, 0
      %p51 = por %p49, %p50
      %p52 = scmp.ne.s32.totalorder %s38, %s39
      %p53 = scmp.eq.s32.totalorder %s31, 1
      %p54 = por %p52, %p53
      %p56 = scmp.ne.s32.totalorder %s39, %s55
      %p57 = scmp.eq.s32.totalorder %s31, 0
      %p58 = por %p56, %p57
      %s60 = sadd.s32 %s59, 1
      %p63 = scmp.eq.s32.totalorder %s25, 1
      %p64 = scmp.ne.s32.totalorder %s59, %s61
      %p65 = scmp.eq.s32.totalorder %s25, 0
      %p66 = por %p64, %p65
      %p67 = scmp.ne.s32.totalorder %s59, %s61
      %p68 = scmp.eq.s32.totalorder %s30, 1
      %p69 = por %p67, %p68
      %p70 = scmp.ne.s32.totalorder %s61, %s62
      %p71 = scmp.eq.s32.totalorder %s30, 0
      %p72 = por %p70, %p71
      %p73 = scmp.ne.s32.totalorder %s61, %s62
      %p74 = scmp.eq.s32.totalorder %s31, 1
      %p75 = por %p73, %p74
      %p77 = scmp.ne.s32.totalorder %s62, %s76
      %p78 = scmp.eq.s32.totalorder %s31, 0
      %p79 = por %p77, %p78
      %s81 = sadd.s32 %s80, 1
      %p84 = scmp.eq.s32.totalorder %s25, 1
      %p85 = scmp.ne.s32.totalorder %s80, %s82
      %p86 = scmp.eq.s32.totalorder %s25, 0
      %p87 = por %p85, %p86
      %p88 = scmp.ne.s32.totalorder %s80, %s82
      %p89 = scmp.eq.s32.totalorder %s30, 1
      %p90 = por %p88, %p89
      %p91 = scmp.ne.s32.totalorder %s82, %s83
      %p92 = scmp.eq.s32.totalorder %s30, 0
      %p93 = por %p91, %p92
      %p94 = scmp.ne.s32.totalorder %s82, %s83
      %p95 = scmp.eq.s32.totalorder %s31, 1
      %p96 = por %p94, %p95
      %p98 = scmp.ne.s32.totalorder %s83, %s97
      %p99 = scmp.eq.s32.totalorder %s31, 0
      %p100 = por %p98, %p99
      %s102 = sadd.s32 %s101, 1
      %p105 = scmp.eq.s32.totalorder %s25, 1
      %p106 = scmp.ne.s32.totalorder %s101, %s103
      %p107 = scmp.eq.s32.totalorder %s25, 0
      %p108 = por %p106, %p107
      %p109 = scmp.ne.s32.totalorder %s101, %s103
      %p110 = scmp.eq.s32.totalorder %s30, 1
      %p111 = por %p109, %p110
      %p112 = scmp.ne.s32.totalorder %s103, %s104
      %p113 = scmp.eq.s32.totalorder %s30, 0
      %p114 = por %p112, %p113
      %p115 = scmp.ne.s32.totalorder %s103, %s104
      %p116 = scmp.eq.s32.totalorder %s31, 1
      %p117 = por %p115, %p116
      %p119 = scmp.ne.s32.totalorder %s104, %s118
      %p120 = scmp.eq.s32.totalorder %s31, 0
      %p121 = por %p119, %p120
      %s123 = sadd.s32 %s122, 1
      %p126 = scmp.eq.s32.totalorder %s25, 1
      %p127 = scmp.ne.s32.totalorder %s122, %s124
      %p128 = scmp.eq.s32.totalorder %s25, 0
      %p129 = por %p127, %p128
      %p130 = scmp.ne.s32.totalorder %s122, %s124
      %p131 = scmp.eq.s32.totalorder %s30, 1
      %p132 = por %p130, %p131
      %p133 = scmp.ne.s32.totalorder %s124, %s125
      %p134 = scmp.eq.s32.totalorder %s30, 0
      %p135 = por %p133, %p134
      %p136 = scmp.ne.s32.totalorder %s124, %s125
      %p137 = scmp.eq.s32.totalorder %s31, 1
      %p138 = por %p136, %p137
      %p140 = scmp.ne.s32.totalorder %s125, %s139
      %p141 = scmp.eq.s32.totalorder %s31, 0
      %p142 = por %p140, %p141
      %s144 = sadd.s32 %s143, 1
      %p147 = scmp.eq.s32.totalorder %s25, 1
      %p148 = scmp.ne.s32.totalorder %s143, %s145
      %p149 = scmp.eq.s32.totalorder %s25, 0
      %p150 = por %p148, %p149
      %p151 = scmp.ne.s32.totalorder %s143, %s145
      %p152 = scmp.eq.s32.totalorder %s30, 1
      %p153 = por %p151, %p152
      %p154 = scmp.ne.s32.totalorder %s145, %s146
      %p155 = scmp.eq.s32.totalorder %s30, 0
      %p156 = por %p154, %p155
      %p157 = scmp.ne.s32.totalorder %s145, %s146
      %p158 = scmp.eq.s32.totalorder %s31, 1
      %p159 = por %p157, %p158
      %p161 = scmp.ne.s32.totalorder %s146, %s160
      %p162 = scmp.eq.s32.totalorder %s31, 0
      %p163 = por %p161, %p162
      %s165 = sadd.s32 %s164, 1
      %p168 = scmp.eq.s32.totalorder %s25, 1
      %p169 = scmp.ne.s32.totalorder %s164, %s166
      %p170 = scmp.eq.s32.totalorder %s25, 0
      %p171 = por %p169, %p170
      %p172 = scmp.ne.s32.totalorder %s164, %s166
      %p173 = scmp.eq.s32.totalorder %s30, 1
      %p174 = por %p172, %p173
      %p175 = scmp.ne.s32.totalorder %s166, %s167
      %p176 = scmp.eq.s32.totalorder %s30, 0
      %p177 = por %p175, %p176
      %p178 = scmp.ne.s32.totalorder %s166, %s167
      %p179 = scmp.eq.s32.totalorder %s31, 1
      %p180 = por %p178, %p179
      %p182 = scmp.ne.s32.totalorder %s167, %s181
      %p183 = scmp.eq.s32.totalorder %s31, 0
      %p184 = por %p182, %p183
      %s186 = sadd.s32 %s185, 1
      %p189 = scmp.eq.s32.totalorder %s25, 1
      %p190 = scmp.ne.s32.totalorder %s185, %s187
      %p191 = scmp.eq.s32.totalorder %s25, 0
      %p192 = por %p190, %p191
      %p193 = scmp.ne.s32.totalorder %s185, %s187
      %p194 = scmp.eq.s32.totalorder %s30, 1
      %p195 = por %p193, %p194
      %p196 = scmp.ne.s32.totalorder %s187, %s188
      %p197 = scmp.eq.s32.totalorder %s30, 0
      %p198 = por %p196, %p197
      %p199 = scmp.ne.s32.totalorder %s187, %s188
      %p200 = scmp.eq.s32.totalorder %s31, 1
      %p201 = por %p199, %p200
      %p203 = scmp.ne.s32.totalorder %s188, %s202
      %p204 = scmp.eq.s32.totalorder %s31, 0
      %p205 = por %p203, %p204
      %s207 = sadd.s32 %s206, 1
      %p210 = scmp.eq.s32.totalorder %s25, 1
      %p211 = scmp.ne.s32.totalorder %s206, %s208
      %p212 = scmp.eq.s32.totalorder %s25, 0
      %p213 = por %p211, %p212
      %p214 = scmp.ne.s32.totalorder %s206, %s208
      %p215 = scmp.eq.s32.totalorder %s30, 1
      %p216 = por %p214, %p215
      %p217 = scmp.ne.s32.totalorder %s208, %s209
      %p218 = scmp.eq.s32.totalorder %s30, 0
      %p219 = por %p217, %p218
      %p220 = scmp.ne.s32.totalorder %s208, %s209
      %p221 = scmp.eq.s32.totalorder %s31, 1
      %p222 = por %p220, %p221
      %p224 = scmp.ne.s32.totalorder %s209, %s223
      %p225 = scmp.eq.s32.totalorder %s31, 0
      %p226 = por %p224, %p225
      %s228 = sadd.s32 %s227, 1
      %p231 = scmp.eq.s32.totalorder %s25, 1
      %p232 = scmp.ne.s32.totalorder %s227, %s229
      %p233 = scmp.eq.s32.totalorder %s25, 0
      %p234 = por %p232, %p233
      %p235 = scmp.ne.s32.totalorder %s227, %s229
      %p236 = scmp.eq.s32.totalorder %s30, 1
      %p237 = por %p235, %p236
      %p238 = scmp.ne.s32.totalorder %s229, %s230
      %p239 = scmp.eq.s32.totalorder %s30, 0
      %p240 = por %p238, %p239
      %p241 = scmp.ne.s32.totalorder %s229, %s230
      %p242 = scmp.eq.s32.totalorder %s31, 1
      %p243 = por %p241, %p242
      %p245 = scmp.ne.s32.totalorder %s230, %s244
      %p246 = scmp.eq.s32.totalorder %s31, 0
      %p247 = por %p245, %p246
      %s248 = ssub.s32 %s25, %s32
      %p249 = scmp.eq.s32.totalorder %s248, 0
      %s251 = sadd.s32 %s250, 1
      %s252 = scalar_select %p249, %s250, %s251
      %p255 = pneg %p249
      %p256 = scmp.eq.s32.totalorder %s25, 1
      %p257 = por %p255, %p256
      %p258 = scmp.ne.s32.totalorder %s250, %s253
      %p259 = scmp.eq.s32.totalorder %s25, 0
      %p260 = por %p258, %p259
      %p261 = scmp.ne.s32.totalorder %s250, %s253
      %p262 = scmp.eq.s32.totalorder %s30, 1
      %p263 = por %p261, %p262
      %p264 = scmp.ne.s32.totalorder %s253, %s254
      %p265 = scmp.eq.s32.totalorder %s30, 0
      %p266 = por %p264, %p265
      %p267 = scmp.ne.s32.totalorder %s253, %s254
      %p268 = scmp.eq.s32.totalorder %s31, 1
      %p269 = por %p267, %p268
      %p271 = scmp.ne.s32.totalorder %s254, %s270
      %p272 = scmp.eq.s32.totalorder %s31, 0
      %p273 = por %p271, %p272
      %s274 = ssub.s32 %s25, %s32
      %p275 = scmp.eq.s32.totalorder %s274, 0
      %s277 = sadd.s32 %s276, 1
      %s278 = scalar_select %p275, %s276, %s277
      %p281 = pneg %p275
      %p282 = scmp.eq.s32.totalorder %s25, 1
      %p283 = por %p281, %p282
      %p284 = scmp.ne.s32.totalorder %s276, %s279
      %p285 = scmp.eq.s32.totalorder %s25, 0
      %p286 = por %p284, %p285
      %p287 = scmp.ne.s32.totalorder %s276, %s279
      %p288 = scmp.eq.s32.totalorder %s30, 1
      %p289 = por %p287, %p288
      %p290 = scmp.ne.s32.totalorder %s279, %s280
      %p291 = scmp.eq.s32.totalorder %s30, 0
      %p292 = por %p290, %p291
      %p293 = scmp.ne.s32.totalorder %s279, %s280
      %p294 = scmp.eq.s32.totalorder %s31, 1
      %p295 = por %p293, %p294
      %p297 = scmp.ne.s32.totalorder %s280, %s296
      %p298 = scmp.eq.s32.totalorder %s31, 0
      %p299 = por %p297, %p298
      %p300 = scmp.le.s32.totalorder 1, %s25
      %p301 = scmp.lt.s32.totalorder %s25, 3
      %p302 = pnand %p300, %p301
      %p303 = pneg %p302
      // Predicated region
      $region9: #{tpu_custom_call.1} parent=5 // pred_check
        _
      $region10: #{tpu_custom_call.1} parent=5 // pred_check_branch
        %305 = sbr.rel (%p302) target = $region12
      $region11: #{tpu_custom_call.1} parent=5 // pred_region
        %s306 = ssub.s32 %s25, 1
        // Predicated region
        $region13: #{tpu_custom_call.1} parent=11 // pred_check
          %p307 = pneg %p72
        $region14: #{tpu_custom_call.1} parent=11 // pred_check_branch
          %309 = sbr.rel (%p307) target = $region16
        $region15: #{tpu_custom_call.1} parent=11 // pred_region
          _
        $region16: #{tpu_custom_call.1} parent=11 // pred_fallthru
          _
        // Predicated region
        $region17: #{tpu_custom_call.1} parent=11 // pred_check
          %p310 = pneg %p93
        $region18: #{tpu_custom_call.1} parent=11 // pred_check_branch
          %312 = sbr.rel (%p310) target = $region20
        $region19: #{tpu_custom_call.1} parent=11 // pred_region
          _
        $region20: #{tpu_custom_call.1} parent=11 // pred_fallthru
          _
        // Predicated region
        $region21: #{tpu_custom_call.1} parent=11 // pred_check
          %p313 = pneg %p114
        $region22: #{tpu_custom_call.1} parent=11 // pred_check_branch
          %315 = sbr.rel (%p313) target = $region24
        $region23: #{tpu_custom_call.1} parent=11 // pred_region
          %s317 = ssub.s32 1024, 1024
          %318 = vsyncadd [#allocation7], %s317
          %s319 = sshll.u32 [#allocation6], 4
          %s320 = int_to_ptr.vmem [resolvable:$true] %s319
          %325 = dma.hbm_to_vmem [thread:$0]  %s3, 1024, %s320, [#allocation7], 256, 256, 16
        $region24: #{tpu_custom_call.1} parent=11 // pred_fallthru
          _
        // Predicated region
        $region25: #{tpu_custom_call.1} parent=11 // pred_check
          %p326 = pneg %p135
        $region26: #{tpu_custom_call.1} parent=11 // pred_check_branch
          %328 = sbr.rel (%p326) target = $region28
        $region27: #{tpu_custom_call.1} parent=11 // pred_region
          %s330 = ssub.s32 4096, 4096
          %331 = vsyncadd [#allocation7], %s330
          %s332 = sshll.u32 [#allocation8], 4
          %s333 = int_to_ptr.vmem [resolvable:$true] %s332
          %338 = dma.hbm_to_vmem [thread:$0]  %s4, 4096, %s333, [#allocation7], 256, 256, 16
        $region28: #{tpu_custom_call.1} parent=11 // pred_fallthru
          _
        // Predicated region
        $region29: #{tpu_custom_call.1} parent=11 // pred_check
          %p339 = pneg %p156
        $region30: #{tpu_custom_call.1} parent=11 // pred_check_branch
          %341 = sbr.rel (%p339) target = $region32
        $region31: #{tpu_custom_call.1} parent=11 // pred_region
          _
        $region32: #{tpu_custom_call.1} parent=11 // pred_fallthru
          _
        // Predicated region
        $region33: #{tpu_custom_call.1} parent=11 // pred_check
          %p342 = pneg %p177
        $region34: #{tpu_custom_call.1} parent=11 // pred_check_branch
          %344 = sbr.rel (%p342) target = $region36
        $region35: #{tpu_custom_call.1} parent=11 // pred_region
          %s346 = ssub.s32 1024, 1024
          %347 = vsyncadd [#allocation10], %s346
          %s348 = sshll.u32 [#allocation9], 4
          %s349 = int_to_ptr.vmem [resolvable:$true] %s348
          %354 = dma.hbm_to_vmem [thread:$0]  %s6, 1024, %s349, [#allocation10], 64, 64, 4
        $region36: #{tpu_custom_call.1} parent=11 // pred_fallthru
          _
        // Predicated region
        $region37: #{tpu_custom_call.1} parent=11 // pred_check
          %p355 = pneg %p198
        $region38: #{tpu_custom_call.1} parent=11 // pred_check_branch
          %357 = sbr.rel (%p355) target = $region40
        $region39: #{tpu_custom_call.1} parent=11 // pred_region
          _
        $region40: #{tpu_custom_call.1} parent=11 // pred_fallthru
          _
        // Predicated region
        $region41: #{tpu_custom_call.1} parent=11 // pred_check
          %p358 = pneg %p219
        $region42: #{tpu_custom_call.1} parent=11 // pred_check_branch
          %360 = sbr.rel (%p358) target = $region44
        $region43: #{tpu_custom_call.1} parent=11 // pred_region
          %s362 = ssub.s32 1024, 1024
          %363 = vsyncadd [#allocation10], %s362
          %s364 = sshll.u32 [#allocation11], 4
          %s365 = int_to_ptr.vmem [resolvable:$true] %s364
          %370 = dma.hbm_to_vmem [thread:$0]  %s8, 1024, %s365, [#allocation10], 64, 64, 4
        $region44: #{tpu_custom_call.1} parent=11 // pred_fallthru
          _
        // Predicated region
        $region45: #{tpu_custom_call.1} parent=11 // pred_check
          %p371 = pneg %p240
        $region46: #{tpu_custom_call.1} parent=11 // pred_check_branch
          %373 = sbr.rel (%p371) target = $region48
        $region47: #{tpu_custom_call.1} parent=11 // pred_region
          _
        $region48: #{tpu_custom_call.1} parent=11 // pred_fallthru
          _
      $region12: #{tpu_custom_call.1} parent=5 // pred_fallthru
        _
      %p374 = scmp.lt.s32.totalorder %s25, 2
      // Predicated region
      $region49: #{tpu_custom_call.1} parent=5 // pred_check
        %p375 = pneg %p374
      $region50: #{tpu_custom_call.1} parent=5 // pred_check_branch
        %377 = sbr.rel (%p375) target = $region52
      $region51: #{tpu_custom_call.1} parent=5 // pred_region
        // Predicated region
        $region53: #{tpu_custom_call.1} parent=51 // pred_check
          %p378 = pneg %p45
        $region54: #{tpu_custom_call.1} parent=51 // pred_check_branch
          %380 = sbr.rel (%p378) target = $region56
        $region55: #{tpu_custom_call.1} parent=51 // pred_region
          %s381 = sand.u32 %s35, 1
          %s382 = scalar_lea.sflag [#allocation4], %s381
          %s383 = sand.u32 %s35, 1
          %s384 = smul.addr %s383, 16
          %s385 = scalar_lea.vmem [#allocation3], %s384
          %s387 = ssub.s32 256, 256
          %388 = vsyncadd %s382, %s387
          %s389 = smul.addr %s25, 2
          %s390 = smul.addr %s389, 128
          %s391 = scalar_lea.hbm %s0, %s390
          %s392 = sshll.u32 %s385, 4
          %s393 = int_to_ptr.vmem [resolvable:$true] %s392
          %398 = dma.hbm_to_vmem [thread:$0]  %s391, 256, %s393, %s382, 128, 128, 8
        $region56: #{tpu_custom_call.1} parent=51 // pred_fallthru
          _
        // Predicated region
        $region57: #{tpu_custom_call.1} parent=51 // pred_check
          %p399 = pneg %p260
        $region58: #{tpu_custom_call.1} parent=51 // pred_check_branch
          %401 = sbr.rel (%p399) target = $region60
        $region59: #{tpu_custom_call.1} parent=51 // pred_region
          %p402 = scmp.lt.s32.totalorder %s25, 1
          %s403 = scalar_select %p402, %s25, 1
          %s404 = scalar_lea.vmem %s10, %s403
        $region60: #{tpu_custom_call.1} parent=51 // pred_fallthru
          _
      $region52: #{tpu_custom_call.1} parent=5 // pred_fallthru
        _
      %p405 = scmp.le.s32.totalorder 1, %s25
      %p406 = scmp.lt.s32.totalorder %s25, 3
      %p407 = pnand %p405, %p406
      %p408 = pneg %p407
      // Predicated region
      $region61: #{tpu_custom_call.1} parent=5 // pred_check
        _
      $region62: #{tpu_custom_call.1} parent=5 // pred_check_branch
        %410 = sbr.rel (%p407) target = $region64
      $region63: #{tpu_custom_call.1} parent=5 // pred_region
        %s411 = ssub.s32 %s25, 1
        %s412 = sand.u32 %s38, 1
        %s413 = scalar_lea.sflag [#allocation4], %s412
        %s414 = sand.u32 %s38, 1
        %s415 = smul.addr %s414, 16
        %s416 = scalar_lea.vmem [#allocation3], %s415
        // Predicated region
        $region65: #{tpu_custom_call.1} parent=63 // pred_check
          %p417 = pneg %p51
        $region66: #{tpu_custom_call.1} parent=63 // pred_check_branch
          %419 = sbr.rel (%p417) target = $region68
        $region67: #{tpu_custom_call.1} parent=63 // pred_region
          %420 = dma.done %s413, 256
        $region68: #{tpu_custom_call.1} parent=63 // pred_fallthru
          _
        // Predicated region
        $region69: #{tpu_custom_call.1} parent=63 // pred_check
          %p421 = pneg %p114
        $region70: #{tpu_custom_call.1} parent=63 // pred_check_branch
          %423 = sbr.rel (%p421) target = $region72
        $region71: #{tpu_custom_call.1} parent=63 // pred_region
          %424 = dma.done [#allocation7], 1024
        $region72: #{tpu_custom_call.1} parent=63 // pred_fallthru
          _
        // Predicated region
        $region73: #{tpu_custom_call.1} parent=63 // pred_check
          %p425 = pneg %p135
        $region74: #{tpu_custom_call.1} parent=63 // pred_check_branch
          %427 = sbr.rel (%p425) target = $region76
        $region75: #{tpu_custom_call.1} parent=63 // pred_region
          %428 = dma.done [#allocation7], 4096
        $region76: #{tpu_custom_call.1} parent=63 // pred_fallthru
          _
        // Predicated region
        $region77: #{tpu_custom_call.1} parent=63 // pred_check
          %p429 = pneg %p177
        $region78: #{tpu_custom_call.1} parent=63 // pred_check_branch
          %431 = sbr.rel (%p429) target = $region80
        $region79: #{tpu_custom_call.1} parent=63 // pred_region
          %432 = dma.done [#allocation10], 1024
        $region80: #{tpu_custom_call.1} parent=63 // pred_fallthru
          _
        // Predicated region
        $region81: #{tpu_custom_call.1} parent=63 // pred_check
          %p433 = pneg %p219
        $region82: #{tpu_custom_call.1} parent=63 // pred_check_branch
          %435 = sbr.rel (%p433) target = $region84
        $region83: #{tpu_custom_call.1} parent=63 // pred_region
          %436 = dma.done [#allocation10], 1024
        $region84: #{tpu_custom_call.1} parent=63 // pred_fallthru
          _
        %s437 = sand.u32 %s38, 1
        %s438 = scalar_lea.sflag [#allocation4], %s437
        %s439 = sand.u32 %s38, 1
        %s440 = smul.addr %s439, 16
        %s441 = scalar_lea.vmem [#allocation3], %s440
        %p442 = pneg %p51
        %p443 = pneg %p48
        %p444 = pneg %p72
        %p445 = pneg %p69
        %p446 = pneg %p93
        %p447 = pneg %p90
        %p448 = pneg %p114
        %p449 = pneg %p111
        %p450 = pneg %p135
        %p451 = pneg %p132
        %p452 = pneg %p156
        %p453 = pneg %p153
        %p454 = pneg %p177
        %p455 = pneg %p174
        %p456 = pneg %p198
        %p457 = pneg %p195
        %p458 = pneg %p219
        %p459 = pneg %p216
        %p460 = pneg %p240
        %p461 = pneg %p237
        %p462 = scmp.lt.s32.totalorder %s30, 1
        %s463 = scalar_select %p462, %s30, 1
        %s464 = scalar_lea.vmem %s10, %s463
        %p465 = pneg %p266
        %p466 = pneg %p263
        %p467 = pneg %p292
        %p468 = pneg %p289
        %s469 = sand.u32 %s279, 1
        %s470 = scalar_lea.sflag [#allocation5], %s469
        %s471 = sand.u32 %s279, 1
        %s472 = scalar_lea.vmem [#allocation12], %s471
        %p473 = scmp.lt.s32.totalorder %s30, 1
        %s474 = scalar_select %p473, %s30, 1
        %s475 = scalar_lea.vmem %s10, %s474
        %v477 = vld [vmem:[%s416] sm:$0xff]
        %v478 = vld [vmem:[%s416 + $0x8] sm:$0xff]
        %v479 = vld [vmem:[%s2] sm:$0x1]
        %v481 = vlaneseq
        %v482 = vshrl.u32 %v481, 7
        %v483 = vsub.s32 0, %v482
        %v484 = vrot.slane %v479, %v483
        %485 = vset.pattern.permute.xlu0 0
        %486 = vperm.xlu0 %485, %v484
        %v487 = vpop.permute.xlu0 %486
        %v489 = vadd.f32 %v487, 0.0
        %v490 = vld [vmem:[%s1] sm:$0x1]
        %v492 = vlaneseq
        %v493 = vshrl.u32 %v492, 7
        %v494 = vsub.s32 0, %v493
        %v495 = vrot.slane %v490, %v494
        %496 = vset.pattern.permute.xlu0 0
        %497 = vperm.xlu0 %496, %v495
        %v498 = vpop.permute.xlu0 %497
        %v500 = vmul.f32 %v498, %v477
        %v501 = vmul.f32 %v498, %v478
        %v502 = vadd.f32 %v489, %v500
        %v503 = vadd.f32 %v489, %v501
        %s504 = scalar_lea.vmem %s1, 1
        %v505 = vld [vmem:[%s504] sm:$0x1]
        %v507 = vlaneseq
        %v508 = vshrl.u32 %v507, 7
        %v509 = vsub.s32 0, %v508
        %v510 = vrot.slane %v505, %v509
        %511 = vset.pattern.permute.xlu0 0
        %512 = vperm.xlu0 %511, %v510
        %v513 = vpop.permute.xlu0 %512
        %v515 = vmul.f32 %v513, %v477
        %v516 = vmul.f32 %v513, %v478
        %vm519 = vcmask 1046528
        %v520 = vrot.slane %v515, 1
        %v521 = vrot.slane %v516, 1
        %v522 = vsel %vm519, %v520, %v521
        %v525 = vadd.f32 %v502, %v522
        %v526 = vadd.f32 %v503, %v521
        %s527 = scalar_lea.vmem %s1, 2
        %v528 = vld [vmem:[%s527] sm:$0x1]
        %v530 = vlaneseq
        %v531 = vshrl.u32 %v530, 7
        %v532 = vsub.s32 0, %v531
        %v533 = vrot.slane %v528, %v532
        %534 = vset.pattern.permute.xlu0 0
        %535 = vperm.xlu0 %534, %v533
        %v536 = vpop.permute.xlu0 %535
        %v538 = vmul.f32 %v536, %v477
        %v539 = vmul.f32 %v536, %v478
        %vm542 = vcmask 1045504
        %v543 = vrot.slane %v538, 2
        %v544 = vrot.slane %v539, 2
        %v545 = vsel %vm542, %v543, %v544
        %v548 = vadd.f32 %v525, %v545
        %v549 = vadd.f32 %v526, %v544
        %v550 = vpack.c.bf16 %v549, %v548
        %v551 = vld [vmem:[#allocation6] sm:$0xff]
        %v552 = vld [vmem:[#allocation6 + $0x8] sm:$0xff]
        %v553 = vld [vmem:[#allocation6 + $0x10] sm:$0xff]
        %v554 = vld [vmem:[#allocation6 + $0x18] sm:$0xff]
        %s555 = scalar_lea.vmem %s2, 1
        %v556 = vld [vmem:[%s555] sm:$0x1]
        %v558 = vlaneseq
        %v559 = vshrl.u32 %v558, 7
        %v560 = vsub.s32 0, %v559
        %v561 = vrot.slane %v556, %v560
        %562 = vset.pattern.permute.xlu0 0
        %563 = vperm.xlu0 %562, %v561
        %v564 = vpop.permute.xlu0 %563
        %v566 = vadd.f32 %v564, 0.0
        %s567 = scalar_lea.vmem %s1, 3
        %v568 = vld [vmem:[%s567] sm:$0x1]
        %v570 = vlaneseq
        %v571 = vshrl.u32 %v570, 7
        %v572 = vsub.s32 0, %v571
        %v573 = vrot.slane %v568, %v572
        %574 = vset.pattern.permute.xlu0 0
        %575 = vperm.xlu0 %574, %v573
        %v576 = vpop.permute.xlu0 %575
        %v578 = vmul.f32 %v576, %v477
        %v579 = vmul.f32 %v576, %v478
        %v580 = vadd.f32 %v566, %v578
        %v581 = vadd.f32 %v566, %v579
        %s582 = scalar_lea.vmem %s1, 4
        %v583 = vld [vmem:[%s582] sm:$0x1]
        %v585 = vlaneseq
        %v586 = vshrl.u32 %v585, 7
        %v587 = vsub.s32 0, %v586
        %v588 = vrot.slane %v583, %v587
        %589 = vset.pattern.permute.xlu0 0
        %590 = vperm.xlu0 %589, %v588
        %v591 = vpop.permute.xlu0 %590
        %v593 = vmul.f32 %v591, %v477
        %v594 = vmul.f32 %v591, %v478
        %v597 = vrot.slane %v593, 1
        %v598 = vrot.slane %v594, 1
        %v599 = vsel %vm519, %v597, %v598
        %v602 = vadd.f32 %v580, %v599
        %v603 = vadd.f32 %v581, %v598
        %s604 = scalar_lea.vmem %s1, 5
        %v605 = vld [vmem:[%s604] sm:$0x1]
        %v607 = vlaneseq
        %v608 = vshrl.u32 %v607, 7
        %v609 = vsub.s32 0, %v608
        %v610 = vrot.slane %v605, %v609
        %611 = vset.pattern.permute.xlu0 0
        %612 = vperm.xlu0 %611, %v610
        %v613 = vpop.permute.xlu0 %612
        %v615 = vmul.f32 %v613, %v477
        %v616 = vmul.f32 %v613, %v478
        %v619 = vrot.slane %v615, 2
        %v620 = vrot.slane %v616, 2
        %v621 = vsel %vm542, %v619, %v620
        %v624 = vadd.f32 %v602, %v621
        %v625 = vadd.f32 %v603, %v620
        %v626 = vpack.c.bf16 %v625, %v624
        %s627 = scalar_lea.vmem [#allocation6], 32
        %v628 = vld [vmem:[%s627] sm:$0xff]
        %v629 = vld [vmem:[%s627 + $0x8] sm:$0xff]
        %v630 = vld [vmem:[%s627 + $0x10] sm:$0xff]
        %v631 = vld [vmem:[%s627 + $0x18] sm:$0xff]
        %v636 = vunpack.c.l.b16 %v628
        %v637 = vunpack.c.h.b16 %v628
        %v638 = vunpack.c.l.b16 %v629
        %v639 = vunpack.c.h.b16 %v629
        %v640 = vunpack.c.l.b16 %v630
        %v641 = vunpack.c.h.b16 %v630
        %v642 = vunpack.c.l.b16 %v631
        %v643 = vunpack.c.h.b16 %v631
        %v644 = vpack.c.b16 %v640, %v636
        %v645 = vpack.c.b16 %v641, %v637
        %v646 = vpack.c.b16 %v642, %v638
        %v647 = vpack.c.b16 %v643, %v639
        %vm652 = vcmask 130048
        %v654 = vsel %vm652, %v626, 0
        %656 = vmatprep.subr.bf16.mxu0 %v645
        %657 = vmatpush1.bf16.msra.mxu0 %v644
        %658 = vmatprep.subr.bf16.mxu0 0
        %659 = vmatpush1.bf16.msra.mxu0 0
        %660 = vmatprep.subr.bf16.mxu0 0
        %661 = vmatpush1.bf16.msra.mxu0 0
        %662 = vmatprep.subr.bf16.mxu0 0
        %663 = vmatpush1.bf16.msra.mxu0 0
        %664 = vmatprep.subr.bf16.mxu0 0
        %665 = vmatpush1.bf16.msra.mxu0 0
        %666 = vmatprep.subr.bf16.mxu0 0
        %667 = vmatpush1.bf16.msra.mxu0 0
        %668 = vmatprep.subr.bf16.mxu0 0
        %669 = vmatpush1.bf16.msra.mxu0 0
        %670 = vmatprep.subr.bf16.mxu0 0
        %671 = vmatpush1.bf16.msra.mxu0 0
        %672 = vmatprep.subr.bf16.mxu0 0
        %673 = vmatpush1.bf16.msra.mxu0 0
        %674 = vmatprep.subr.bf16.mxu0 0
        %675 = vmatpush1.bf16.msra.mxu0 0
        %676 = vmatprep.subr.bf16.mxu0 0
        %677 = vmatpush1.bf16.msra.mxu0 0
        %678 = vmatprep.subr.bf16.mxu0 0
        %679 = vmatpush1.bf16.msra.mxu0 0
        %680 = vmatprep.subr.bf16.mxu0 0
        %681 = vmatpush1.bf16.msra.mxu0 0
        %682 = vmatprep.subr.bf16.mxu0 0
        %683 = vmatpush1.bf16.msra.mxu0 0
        %684 = vmatprep.subr.bf16.mxu0 0
        %685 = vmatpush1.bf16.msra.mxu0 0
        %686 = vmatprep.subr.bf16.mxu0 0
        %687 = vmatpush1.bf16.msra.mxu0 0
        %688 = vmatprep.mubr.bf16.mxu0 0
        %689 = vmatmul.mubr.bf16.gmra.mrb[0].mxu0 %v654
        %v690 = vpop.f32.mrb[0].mxu0
        %v691 = vadd.f32 0.0, %v690
        %v692 = vpop.f32.mrb[0].mxu0
        %v693 = vadd.f32 0.0, %v692
        %v694 = vpop.f32.mrb[0].mxu0
        %v695 = vadd.f32 0.0, %v694
        %v696 = vpop.f32.mrb[0].mxu0
        %v697 = vadd.f32 0.0, %v696
        %698 = vdwg.mxu0
        %699 = vmatprep.subr.bf16.mxu0 %v647
        %700 = vmatpush1.bf16.msra.mxu0 %v646
        %701 = vmatprep.subr.bf16.mxu0 0
        %702 = vmatpush1.bf16.msra.mxu0 0
        %703 = vmatprep.subr.bf16.mxu0 0
        %704 = vmatpush1.bf16.msra.mxu0 0
        %705 = vmatprep.subr.bf16.mxu0 0
        %706 = vmatpush1.bf16.msra.mxu0 0
        %707 = vmatprep.subr.bf16.mxu0 0
        %708 = vmatpush1.bf16.msra.mxu0 0
        %709 = vmatprep.subr.bf16.mxu0 0
        %710 = vmatpush1.bf16.msra.mxu0 0
        %711 = vmatprep.subr.bf16.mxu0 0
        %712 = vmatpush1.bf16.msra.mxu0 0
        %713 = vmatprep.subr.bf16.mxu0 0
        %714 = vmatpush1.bf16.msra.mxu0 0
        %715 = vmatprep.subr.bf16.mxu0 0
        %716 = vmatpush1.bf16.msra.mxu0 0
        %717 = vmatprep.subr.bf16.mxu0 0
        %718 = vmatpush1.bf16.msra.mxu0 0
        %719 = vmatprep.subr.bf16.mxu0 0
        %720 = vmatpush1.bf16.msra.mxu0 0
        %721 = vmatprep.subr.bf16.mxu0 0
        %722 = vmatpush1.bf16.msra.mxu0 0
        %723 = vmatprep.subr.bf16.mxu0 0
        %724 = vmatpush1.bf16.msra.mxu0 0
        %725 = vmatprep.subr.bf16.mxu0 0
        %726 = vmatpush1.bf16.msra.mxu0 0
        %727 = vmatprep.subr.bf16.mxu0 0
        %728 = vmatpush1.bf16.msra.mxu0 0
        %729 = vmatprep.subr.bf16.mxu0 0
        %730 = vmatpush1.bf16.msra.mxu0 0
        %731 = vmatprep.mubr.bf16.mxu0 0
        %732 = vmatmul.mubr.bf16.gmra.mrb[0].mxu0 %v654
        %v733 = vpop.f32.mrb[0].mxu0
        %v734 = vadd.f32 0.0, %v733
        %v735 = vpop.f32.mrb[0].mxu0
        %v736 = vadd.f32 0.0, %v735
        %v737 = vpop.f32.mrb[0].mxu0
        %v738 = vadd.f32 0.0, %v737
        %v739 = vpop.f32.mrb[0].mxu0
        %v740 = vadd.f32 0.0, %v739
        %741 = vdwg.mxu0
        %v746 = vunpack.c.l.b16 %v551
        %v747 = vunpack.c.h.b16 %v551
        %v748 = vunpack.c.l.b16 %v552
        %v749 = vunpack.c.h.b16 %v552
        %v750 = vunpack.c.l.b16 %v553
        %v751 = vunpack.c.h.b16 %v553
        %v752 = vunpack.c.l.b16 %v554
        %v753 = vunpack.c.h.b16 %v554
        %v754 = vpack.c.b16 %v750, %v746
        %v755 = vpack.c.b16 %v751, %v747
        %v756 = vpack.c.b16 %v752, %v748
        %v757 = vpack.c.b16 %v753, %v749
        %v763 = vsel %vm652, %v550, 0
        %765 = vmatprep.subr.bf16.mxu0 %v755
        %766 = vmatpush1.bf16.msra.mxu0 %v754
        %767 = vmatprep.subr.bf16.mxu0 0
        %768 = vmatpush1.bf16.msra.mxu0 0
        %769 = vmatprep.subr.bf16.mxu0 0
        %770 = vmatpush1.bf16.msra.mxu0 0
        %771 = vmatprep.subr.bf16.mxu0 0
        %772 = vmatpush1.bf16.msra.mxu0 0
        %773 = vmatprep.subr.bf16.mxu0 0
        %774 = vmatpush1.bf16.msra.mxu0 0
        %775 = vmatprep.subr.bf16.mxu0 0
        %776 = vmatpush1.bf16.msra.mxu0 0
        %777 = vmatprep.subr.bf16.mxu0 0
        %778 = vmatpush1.bf16.msra.mxu0 0
        %779 = vmatprep.subr.bf16.mxu0 0
        %780 = vmatpush1.bf16.msra.mxu0 0
        %781 = vmatprep.subr.bf16.mxu0 0
        %782 = vmatpush1.bf16.msra.mxu0 0
        %783 = vmatprep.subr.bf16.mxu0 0
        %784 = vmatpush1.bf16.msra.mxu0 0
        %785 = vmatprep.subr.bf16.mxu0 0
        %786 = vmatpush1.bf16.msra.mxu0 0
        %787 = vmatprep.subr.bf16.mxu0 0
        %788 = vmatpush1.bf16.msra.mxu0 0
        %789 = vmatprep.subr.bf16.mxu0 0
        %790 = vmatpush1.bf16.msra.mxu0 0
        %791 = vmatprep.subr.bf16.mxu0 0
        %792 = vmatpush1.bf16.msra.mxu0 0
        %793 = vmatprep.subr.bf16.mxu0 0
        %794 = vmatpush1.bf16.msra.mxu0 0
        %795 = vmatprep.subr.bf16.mxu0 0
        %796 = vmatpush1.bf16.msra.mxu0 0
        %797 = vmatprep.mubr.bf16.mxu0 0
        %798 = vmatmul.mubr.bf16.gmra.mrb[0].mxu0 %v763
        %v799 = vpop.f32.mrb[0].mxu0
        %v800 = vadd.f32 %v691, %v799
        %v801 = vpop.f32.mrb[0].mxu0
        %v802 = vadd.f32 %v693, %v801
        %v803 = vpop.f32.mrb[0].mxu0
        %v804 = vadd.f32 %v695, %v803
        %v805 = vpop.f32.mrb[0].mxu0
        %v806 = vadd.f32 %v697, %v805
        %807 = vdwg.mxu0
        %808 = vmatprep.subr.bf16.mxu0 %v757
        %809 = vmatpush1.bf16.msra.mxu0 %v756
        %810 = vmatprep.subr.bf16.mxu0 0
        %811 = vmatpush1.bf16.msra.mxu0 0
        %812 = vmatprep.subr.bf16.mxu0 0
        %813 = vmatpush1.bf16.msra.mxu0 0
        %814 = vmatprep.subr.bf16.mxu0 0
        %815 = vmatpush1.bf16.msra.mxu0 0
        %816 = vmatprep.subr.bf16.mxu0 0
        %817 = vmatpush1.bf16.msra.mxu0 0
        %818 = vmatprep.subr.bf16.mxu0 0
        %819 = vmatpush1.bf16.msra.mxu0 0
        %820 = vmatprep.subr.bf16.mxu0 0
        %821 = vmatpush1.bf16.msra.mxu0 0
        %822 = vmatprep.subr.bf16.mxu0 0
        %823 = vmatpush1.bf16.msra.mxu0 0
        %824 = vmatprep.subr.bf16.mxu0 0
        %825 = vmatpush1.bf16.msra.mxu0 0
        %826 = vmatprep.subr.bf16.mxu0 0
        %827 = vmatpush1.bf16.msra.mxu0 0
        %828 = vmatprep.subr.bf16.mxu0 0
        %829 = vmatpush1.bf16.msra.mxu0 0
        %830 = vmatprep.subr.bf16.mxu0 0
        %831 = vmatpush1.bf16.msra.mxu0 0
        %832 = vmatprep.subr.bf16.mxu0 0
        %833 = vmatpush1.bf16.msra.mxu0 0
        %834 = vmatprep.subr.bf16.mxu0 0
        %835 = vmatpush1.bf16.msra.mxu0 0
        %836 = vmatprep.subr.bf16.mxu0 0
        %837 = vmatpush1.bf16.msra.mxu0 0
        %838 = vmatprep.subr.bf16.mxu0 0
        %839 = vmatpush1.bf16.msra.mxu0 0
        %840 = vmatprep.mubr.bf16.mxu0 0
        %841 = vmatmul.mubr.bf16.gmra.mrb[0].mxu0 %v763
        %v842 = vpop.f32.mrb[0].mxu0
        %v843 = vadd.f32 %v734, %v842
        %v844 = vpop.f32.mrb[0].mxu0
        %v845 = vadd.f32 %v736, %v844
        %v846 = vpop.f32.mrb[0].mxu0
        %v847 = vadd.f32 %v738, %v846
        %v848 = vpop.f32.mrb[0].mxu0
        %v849 = vadd.f32 %v740, %v848
        %850 = vdwg.mxu0
        %v851 = vld [vmem:[%s5] sm:$0xf]
        %v853 = vlaneseq
        %v854 = vshrl.u32 %v853, 7
        %v855 = vsub.s32 0, %v854
        %v856 = vrot.slane %v851, %v855
        %v857 = vlaneseq
        %v858 = vshrl.u32 %v857, 7
        %v859 = vsub.s32 1, %v858
        %v860 = vrot.slane %v851, %v859
        %v861 = vlaneseq
        %v862 = vshrl.u32 %v861, 7
        %v863 = vsub.s32 2, %v862
        %v864 = vrot.slane %v851, %v863
        %v865 = vlaneseq
        %v866 = vshrl.u32 %v865, 7
        %v867 = vsub.s32 3, %v866
        %v868 = vrot.slane %v851, %v867
        %v873 = vadd.f32 %v800, %v856
        %v874 = vadd.f32 %v802, %v860
        %v875 = vadd.f32 %v843, %v864
        %v876 = vadd.f32 %v845, %v868
        %v877 = vadd.f32 %v804, %v856
        %v878 = vadd.f32 %v806, %v860
        %v879 = vadd.f32 %v847, %v864
        %v880 = vadd.f32 %v849, %v868
        %881 = vst [vmem:[#allocation2] sm:$0xff] %v873
        %882 = vst [vmem:[#allocation2 + $0x8] sm:$0xff] %v874
        %883 = vst [vmem:[#allocation2 + $0x10] sm:$0xff] %v875
        %884 = vst [vmem:[#allocation2 + $0x18] sm:$0xff] %v876
        %885 = vst [vmem:[#allocation2 + $0x20] sm:$0x3f] %v877
        %886 = vst [vmem:[#allocation2 + $0x28] sm:$0x3f] %v878
        %887 = vst [vmem:[#allocation2 + $0x30] sm:$0x3f] %v879
        %888 = vst [vmem:[#allocation2 + $0x38] sm:$0x3f] %v880
        %v889 = vld [vmem:[#allocation8] sm:$0xff]
        %v890 = vld [vmem:[#allocation8 + $0x8] sm:$0xff]
        %v891 = vld [vmem:[#allocation8 + $0x10] sm:$0xff]
        %v892 = vld [vmem:[#allocation8 + $0x18] sm:$0xff]
        %v893 = vld [vmem:[#allocation8 + $0x20] sm:$0xff]
        %v894 = vld [vmem:[#allocation8 + $0x28] sm:$0xff]
        %v895 = vld [vmem:[#allocation8 + $0x30] sm:$0xff]
        %v896 = vld [vmem:[#allocation8 + $0x38] sm:$0xff]
        %v897 = vld [vmem:[#allocation8 + $0x40] sm:$0xff]
        %v898 = vld [vmem:[#allocation8 + $0x48] sm:$0xff]
        %v899 = vld [vmem:[#allocation8 + $0x50] sm:$0xff]
        %v900 = vld [vmem:[#allocation8 + $0x58] sm:$0xff]
        %v901 = vld [vmem:[#allocation8 + $0x60] sm:$0xff]
        %v902 = vld [vmem:[#allocation8 + $0x68] sm:$0xff]
        %v903 = vld [vmem:[#allocation8 + $0x70] sm:$0xff]
        %v904 = vld [vmem:[#allocation8 + $0x78] sm:$0xff]
        %v905 = vld [vmem:[#allocation8 + $0x80] sm:$0xff]
        %v906 = vld [vmem:[#allocation8 + $0x88] sm:$0xff]
        %v907 = vld [vmem:[#allocation8 + $0x90] sm:$0xff]
        %v908 = vld [vmem:[#allocation8 + $0x98] sm:$0xff]
        %v909 = vld [vmem:[#allocation8 + $0xa0] sm:$0xff]
        %v910 = vld [vmem:[#allocation8 + $0xa8] sm:$0xff]
        %v911 = vld [vmem:[#allocation8 + $0xb0] sm:$0xff]
        %v912 = vld [vmem:[#allocation8 + $0xb8] sm:$0xff]
        %v913 = vld [vmem:[#allocation8 + $0xc0] sm:$0xff]
        %v914 = vld [vmem:[#allocation8 + $0xc8] sm:$0xff]
        %v915 = vld [vmem:[#allocation8 + $0xd0] sm:$0xff]
        %v916 = vld [vmem:[#allocation8 + $0xd8] sm:$0xff]
        %v917 = vld [vmem:[#allocation8 + $0xe0] sm:$0xff]
        %v918 = vld [vmem:[#allocation8 + $0xe8] sm:$0xff]
        %v919 = vld [vmem:[#allocation8 + $0xf0] sm:$0xff]
        %v920 = vld [vmem:[#allocation8 + $0xf8] sm:$0xff]
        %v921 = vld [vmem:[%s475] sm:$0x1]
        loop: start=0, step=1, limit=14
        $region85: #{tpu_custom_call.1} parent=63 // loop_pre_header
          _
        $region86: #{tpu_custom_call.1} parent=63 // loop_header
          %s923 = sphi 0, %s927
          %p924 = scmp.ge.s32.totalorder %s923, 14
          %v928 = vphi 0.0, %v1237
          %v929 = vphi 0.0, %v1235
          %v930 = vphi 0.0, %v1249
        $region87: #{tpu_custom_call.1} parent=63 // loop_header_branch
          %926 = sbr.rel (%p924) target = $region91
        $region88: #{tpu_custom_call.1} parent=63 // loop_body
          %s931 = sshra.s32 %s923, 3
          %s932 = sand.u32 %s923, 7
          %s933 = sshra.s32 %s923, 3
          %s934 = sand.u32 %s923, 7
          %s935 = smul.u32 %s931, 4
          %s936 = smul.u32 %s935, 8
          %s937 = sadd.s32 %s936, %s934
          %s938 = scalar_lea.vmem [#allocation2], %s937
          %v939 = vld [vmem:[%s938] ss:$8 sm:$0xf]
          %v940 = vpack.c.bf16 %v928, %v928
          %v973 = vunpack.c.l.b16 %v889
          %v974 = vunpack.c.h.b16 %v889
          %v975 = vunpack.c.l.b16 %v890
          %v976 = vunpack.c.h.b16 %v890
          %v977 = vunpack.c.l.b16 %v891
          %v978 = vunpack.c.h.b16 %v891
          %v979 = vunpack.c.l.b16 %v892
          %v980 = vunpack.c.h.b16 %v892
          %v981 = vunpack.c.l.b16 %v893
          %v982 = vunpack.c.h.b16 %v893
          %v983 = vunpack.c.l.b16 %v894
          %v984 = vunpack.c.h.b16 %v894
          %v985 = vunpack.c.l.b16 %v895
          %v986 = vunpack.c.h.b16 %v895
          %v987 = vunpack.c.l.b16 %v896
          %v988 = vunpack.c.h.b16 %v896
          %v989 = vunpack.c.l.b16 %v897
          %v990 = vunpack.c.h.b16 %v897
          %v991 = vunpack.c.l.b16 %v898
          %v992 = vunpack.c.h.b16 %v898
          %v993 = vunpack.c.l.b16 %v899
          %v994 = vunpack.c.h.b16 %v899
          %v995 = vunpack.c.l.b16 %v900
          %v996 = vunpack.c.h.b16 %v900
          %v997 = vunpack.c.l.b16 %v901
          %v998 = vunpack.c.h.b16 %v901
          %v999 = vunpack.c.l.b16 %v902
          %v1000 = vunpack.c.h.b16 %v902
          %v1001 = vunpack.c.l.b16 %v903
          %v1002 = vunpack.c.h.b16 %v903
          %v1003 = vunpack.c.l.b16 %v904
          %v1004 = vunpack.c.h.b16 %v904
          %v1005 = vunpack.c.l.b16 %v905
          %v1006 = vunpack.c.h.b16 %v905
          %v1007 = vunpack.c.l.b16 %v906
          %v1008 = vunpack.c.h.b16 %v906
          %v1009 = vunpack.c.l.b16 %v907
          %v1010 = vunpack.c.h.b16 %v907
          %v1011 = vunpack.c.l.b16 %v908
          %v1012 = vunpack.c.h.b16 %v908
          %v1013 = vunpack.c.l.b16 %v909
          %v1014 = vunpack.c.h.b16 %v909
          %v1015 = vunpack.c.l.b16 %v910
          %v1016 = vunpack.c.h.b16 %v910
          %v1017 = vunpack.c.l.b16 %v911
          %v1018 = vunpack.c.h.b16 %v911
          %v1019 = vunpack.c.l.b16 %v912
          %v1020 = vunpack.c.h.b16 %v912
          %v1021 = vunpack.c.l.b16 %v913
          %v1022 = vunpack.c.h.b16 %v913
          %v1023 = vunpack.c.l.b16 %v914
          %v1024 = vunpack.c.h.b16 %v914
          %v1025 = vunpack.c.l.b16 %v915
          %v1026 = vunpack.c.h.b16 %v915
          %v1027 = vunpack.c.l.b16 %v916
          %v1028 = vunpack.c.h.b16 %v916
          %v1029 = vunpack.c.l.b16 %v917
          %v1030 = vunpack.c.h.b16 %v917
          %v1031 = vunpack.c.l.b16 %v918
          %v1032 = vunpack.c.h.b16 %v918
          %v1033 = vunpack.c.l.b16 %v919
          %v1034 = vunpack.c.h.b16 %v919
          %v1035 = vunpack.c.l.b16 %v920
          %v1036 = vunpack.c.h.b16 %v920
          %v1037 = vpack.c.b16 %v977, %v973
          %v1038 = vpack.c.b16 %v978, %v974
          %v1039 = vpack.c.b16 %v979, %v975
          %v1040 = vpack.c.b16 %v980, %v976
          %v1041 = vpack.c.b16 %v985, %v981
          %v1042 = vpack.c.b16 %v986, %v982
          %v1043 = vpack.c.b16 %v987, %v983
          %v1044 = vpack.c.b16 %v988, %v984
          %v1045 = vpack.c.b16 %v993, %v989
          %v1046 = vpack.c.b16 %v994, %v990
          %v1047 = vpack.c.b16 %v995, %v991
          %v1048 = vpack.c.b16 %v996, %v992
          %v1049 = vpack.c.b16 %v1001, %v997
          %v1050 = vpack.c.b16 %v1002, %v998
          %v1051 = vpack.c.b16 %v1003, %v999
          %v1052 = vpack.c.b16 %v1004, %v1000
          %v1053 = vpack.c.b16 %v1009, %v1005
          %v1054 = vpack.c.b16 %v1010, %v1006
          %v1055 = vpack.c.b16 %v1011, %v1007
          %v1056 = vpack.c.b16 %v1012, %v1008
          %v1057 = vpack.c.b16 %v1017, %v1013
          %v1058 = vpack.c.b16 %v1018, %v1014
          %v1059 = vpack.c.b16 %v1019, %v1015
          %v1060 = vpack.c.b16 %v1020, %v1016
          %v1061 = vpack.c.b16 %v1025, %v1021
          %v1062 = vpack.c.b16 %v1026, %v1022
          %v1063 = vpack.c.b16 %v1027, %v1023
          %v1064 = vpack.c.b16 %v1028, %v1024
          %v1065 = vpack.c.b16 %v1033, %v1029
          %v1066 = vpack.c.b16 %v1034, %v1030
          %v1067 = vpack.c.b16 %v1035, %v1031
          %v1068 = vpack.c.b16 %v1036, %v1032
          %1101 = vmatprep.subr.bf16.mxu0 %v1038
          %1102 = vmatpush1.bf16.msra.mxu0 %v1037
          %1103 = vmatprep.subr.bf16.mxu0 %v1042
          %1104 = vmatpush1.bf16.msra.mxu0 %v1041
          %1105 = vmatprep.subr.bf16.mxu0 %v1046
          %1106 = vmatpush1.bf16.msra.mxu0 %v1045
          %1107 = vmatprep.subr.bf16.mxu0 %v1050
          %1108 = vmatpush1.bf16.msra.mxu0 %v1049
          %1109 = vmatprep.subr.bf16.mxu0 %v1054
          %1110 = vmatpush1.bf16.msra.mxu0 %v1053
          %1111 = vmatprep.subr.bf16.mxu0 %v1058
          %1112 = vmatpush1.bf16.msra.mxu0 %v1057
          %1113 = vmatprep.subr.bf16.mxu0 %v1062
          %1114 = vmatpush1.bf16.msra.mxu0 %v1061
          %1115 = vmatprep.subr.bf16.mxu0 %v1066
          %1116 = vmatpush1.bf16.msra.mxu0 %v1065
          %1117 = vmatprep.subr.bf16.mxu0 0
          %1118 = vmatpush1.bf16.msra.mxu0 0
          %1119 = vmatprep.subr.bf16.mxu0 0
          %1120 = vmatpush1.bf16.msra.mxu0 0
          %1121 = vmatprep.subr.bf16.mxu0 0
          %1122 = vmatpush1.bf16.msra.mxu0 0
          %1123 = vmatprep.subr.bf16.mxu0 0
          %1124 = vmatpush1.bf16.msra.mxu0 0
          %1125 = vmatprep.subr.bf16.mxu0 0
          %1126 = vmatpush1.bf16.msra.mxu0 0
          %1127 = vmatprep.subr.bf16.mxu0 0
          %1128 = vmatpush1.bf16.msra.mxu0 0
          %1129 = vmatprep.subr.bf16.mxu0 0
          %1130 = vmatpush1.bf16.msra.mxu0 0
          %1131 = vmatprep.subr.bf16.mxu0 0
          %1132 = vmatpush1.bf16.msra.mxu0 0
          %1133 = vmatprep.mubr.bf16.mxu0 0
          %1134 = vmatmul.mubr.bf16.gmra.mrb[0].mxu0 %v940
          %v1135 = vpop.f32.mrb[0].mxu0
          %v1136 = vadd.f32 0.0, %v1135
          %v1137 = vpop.f32.mrb[0].mxu0
          %v1138 = vadd.f32 0.0, %v1137
          %v1139 = vpop.f32.mrb[0].mxu0
          %v1140 = vpop.f32.mrb[0].mxu0
          %1141 = vdwg.mxu0
          %1142 = vmatprep.subr.bf16.mxu0 %v1040
          %1143 = vmatpush1.bf16.msra.mxu0 %v1039
          %1144 = vmatprep.subr.bf16.mxu0 %v1044
          %1145 = vmatpush1.bf16.msra.mxu0 %v1043
          %1146 = vmatprep.subr.bf16.mxu0 %v1048
          %1147 = vmatpush1.bf16.msra.mxu0 %v1047
          %1148 = vmatprep.subr.bf16.mxu0 %v1052
          %1149 = vmatpush1.bf16.msra.mxu0 %v1051
          %1150 = vmatprep.subr.bf16.mxu0 %v1056
          %1151 = vmatpush1.bf16.msra.mxu0 %v1055
          %1152 = vmatprep.subr.bf16.mxu0 %v1060
          %1153 = vmatpush1.bf16.msra.mxu0 %v1059
          %1154 = vmatprep.subr.bf16.mxu0 %v1064
          %1155 = vmatpush1.bf16.msra.mxu0 %v1063
          %1156 = vmatprep.subr.bf16.mxu0 %v1068
          %1157 = vmatpush1.bf16.msra.mxu0 %v1067
          %1158 = vmatprep.subr.bf16.mxu0 0
          %1159 = vmatpush1.bf16.msra.mxu0 0
          %1160 = vmatprep.subr.bf16.mxu0 0
          %1161 = vmatpush1.bf16.msra.mxu0 0
          %1162 = vmatprep.subr.bf16.mxu0 0
          %1163 = vmatpush1.bf16.msra.mxu0 0
          %1164 = vmatprep.subr.bf16.mxu0 0
          %1165 = vmatpush1.bf16.msra.mxu0 0
          %1166 = vmatprep.subr.bf16.mxu0 0
          %1167 = vmatpush1.bf16.msra.mxu0 0
          %1168 = vmatprep.subr.bf16.mxu0 0
          %1169 = vmatpush1.bf16.msra.mxu0 0
          %1170 = vmatprep.subr.bf16.mxu0 0
          %1171 = vmatpush1.bf16.msra.mxu0 0
          %1172 = vmatprep.subr.bf16.mxu0 0
          %1173 = vmatpush1.bf16.msra.mxu0 0
          %1174 = vmatprep.mubr.bf16.mxu0 0
          %1175 = vmatmul.mubr.bf16.gmra.mrb[0].mxu0 %v940
          %v1176 = vpop.f32.mrb[0].mxu0
          %v1177 = vadd.f32 0.0, %v1176
          %v1178 = vpop.f32.mrb[0].mxu0
          %v1179 = vadd.f32 0.0, %v1178
          %v1180 = vpop.f32.mrb[0].mxu0
          %v1181 = vpop.f32.mrb[0].mxu0
          %1182 = vdwg.mxu0
          %v1187 = vcombine.low %v1136, %v1138
          %v1188 = vcombine.low %v1177, %v1179
          %v1190 = vunpack.c.l.s4 1966171168
          %v1191 = vunpack.c.0.s8 %v1190
          %v1192 = vlaneseq
          %v1193 = vshrl.u32 %v1192, 7
          %v1194 = vsub.s32 %v1191, %v1193
          %v1195 = vrot.slane %v1187, %v1194
          %v1197 = vunpack.c.l.s4 1966171168
          %v1198 = vunpack.c.0.s8 %v1197
          %v1199 = vlaneseq
          %v1200 = vshrl.u32 %v1199, 7
          %v1201 = vsub.s32 %v1198, %v1200
          %v1202 = vrot.slane %v1188, %v1201
          %v1203 = vcombine.low %v1195, %v1202
          %v1205 = vunpack.c.l.s4 1966171168
          %v1206 = vunpack.c.0.s8 %v1205
          %v1207 = vlaneseq
          %v1208 = vshrl.u32 %v1207, 7
          %v1209 = vsub.s32 %v1206, %v1208
          %v1210 = vrot.slane %v1203, %v1209
          %v1212 = vadd.f32 %v939, %v1210
          %v1213 = vmul.f32 %v1212, 0.5
          %v1214 = vtanh.pop %v1213
          %v1215 = vadd.f32 %v1214, 1.0
          %v1216 = vmul.f32 %v1215, 0.5
          %v1218 = vrot.slane %v1212, 1
          %v1220 = vmul.f32 %v1218, 0.5
          %v1221 = vtanh.pop %v1220
          %v1222 = vadd.f32 %v1221, 1.0
          %v1223 = vmul.f32 %v1222, 0.5
          %v1224 = vrot.slane %v1212, 2
          %v1226 = vtanh.pop %v1224
          %v1227 = vrot.slane %v1212, 3
          %v1229 = vmul.f32 %v1227, 0.5
          %v1230 = vtanh.pop %v1229
          %v1231 = vadd.f32 %v1230, 1.0
          %v1232 = vmul.f32 %v1231, 0.5
          %v1233 = vmul.f32 %v1223, %v929
          %v1234 = vmul.f32 %v1216, %v1226
          %v1235 = vadd.f32 %v1233, %v1234
          %v1236 = vtanh.pop %v1235
          %v1237 = vmul.f32 %v1232, %v1236
          %v1238 = vstv %s923
          %vm1239 = vcmp.eq.s32.totalorder %v921, %v1238
          %v1240 = vsel %vm1239, 1, 0
          %1241 = vset.pattern.permute.xlu0 0
          %1242 = vperm.xlu0 %1241, %v1240
          %v1243 = vpop.permute.xlu0 %1242
          %v1244 = vlaneseq
          %v1245 = vshrl.u32 %v1244, 7
          %v1246 = vsub.s32 0, %v1245
          %v1247 = vrot.slane %v1243, %v1246
          %vm1248 = vcmp.eq.s32.totalorder %v1247, 1
          %v1249 = vsel %vm1248, %v1237, %v930
        $region89: #{tpu_custom_call.1} parent=63 // loop_footer
          %s927 = sadd.s32 1, %s923
        $region90: #{tpu_custom_call.1} parent=63 // loop_footer_branch
          %922 = sbr.rel target = $region86
        $region91: #{tpu_custom_call.1} parent=63 // loop_exit
          _
        %v1250 = vpack.c.bf16 %v930, %v930
        %v1251 = vld [vmem:[#allocation9] sm:$0xf]
        %v1252 = vld [vmem:[#allocation9 + $0x4] sm:$0xf]
        %v1253 = vld [vmem:[#allocation9 + $0x8] sm:$0xf]
        %v1254 = vld [vmem:[#allocation9 + $0xc] sm:$0xf]
        %v1255 = vld [vmem:[#allocation9 + $0x10] sm:$0xf]
        %v1256 = vld [vmem:[#allocation9 + $0x14] sm:$0xf]
        %v1257 = vld [vmem:[#allocation9 + $0x18] sm:$0xf]
        %v1258 = vld [vmem:[#allocation9 + $0x1c] sm:$0xf]
        %v1259 = vld [vmem:[#allocation9 + $0x20] sm:$0xf]
        %v1260 = vld [vmem:[#allocation9 + $0x24] sm:$0xf]
        %v1261 = vld [vmem:[#allocation9 + $0x28] sm:$0xf]
        %v1262 = vld [vmem:[#allocation9 + $0x2c] sm:$0xf]
        %v1263 = vld [vmem:[#allocation9 + $0x30] sm:$0xf]
        %v1264 = vld [vmem:[#allocation9 + $0x34] sm:$0xf]
        %v1265 = vld [vmem:[#allocation9 + $0x38] sm:$0xf]
        %v1266 = vld [vmem:[#allocation9 + $0x3c] sm:$0xf]
        %v1267 = vld [vmem:[%s7] sm:$0x1]
        %v1284 = vunpack.c.l.b16 %v1251
        %v1285 = vunpack.c.l.b16 %v1252
        %v1286 = vunpack.c.l.b16 %v1253
        %v1287 = vunpack.c.l.b16 %v1254
        %v1288 = vunpack.c.l.b16 %v1255
        %v1289 = vunpack.c.l.b16 %v1256
        %v1290 = vunpack.c.l.b16 %v1257
        %v1291 = vunpack.c.l.b16 %v1258
        %v1292 = vunpack.c.l.b16 %v1259
        %v1293 = vunpack.c.l.b16 %v1260
        %v1294 = vunpack.c.l.b16 %v1261
        %v1295 = vunpack.c.l.b16 %v1262
        %v1296 = vunpack.c.l.b16 %v1263
        %v1297 = vunpack.c.l.b16 %v1264
        %v1298 = vunpack.c.l.b16 %v1265
        %v1299 = vunpack.c.l.b16 %v1266
        %v1300 = vpack.c.b16 %v1285, %v1284
        %v1301 = vpack.c.b16 %v1287, %v1286
        %v1302 = vpack.c.b16 %v1289, %v1288
        %v1303 = vpack.c.b16 %v1291, %v1290
        %v1304 = vpack.c.b16 %v1293, %v1292
        %v1305 = vpack.c.b16 %v1295, %v1294
        %v1306 = vpack.c.b16 %v1297, %v1296
        %v1307 = vpack.c.b16 %v1299, %v1298
        %1316 = vmatprep.subr.bf16.mxu0 0
        %1317 = vmatpush1.bf16.msra.mxu0 %v1300
        %1318 = vmatprep.subr.bf16.mxu0 0
        %1319 = vmatpush1.bf16.msra.mxu0 %v1301
        %1320 = vmatprep.subr.bf16.mxu0 0
        %1321 = vmatpush1.bf16.msra.mxu0 %v1302
        %1322 = vmatprep.subr.bf16.mxu0 0
        %1323 = vmatpush1.bf16.msra.mxu0 %v1303
        %1324 = vmatprep.subr.bf16.mxu0 0
        %1325 = vmatpush1.bf16.msra.mxu0 %v1304
        %1326 = vmatprep.subr.bf16.mxu0 0
        %1327 = vmatpush1.bf16.msra.mxu0 %v1305
        %1328 = vmatprep.subr.bf16.mxu0 0
        %1329 = vmatpush1.bf16.msra.mxu0 %v1306
        %1330 = vmatprep.subr.bf16.mxu0 0
        %1331 = vmatpush1.bf16.msra.mxu0 %v1307
        %1332 = vmatprep.subr.bf16.mxu0 0
        %1333 = vmatpush1.bf16.msra.mxu0 0
        %1334 = vmatprep.subr.bf16.mxu0 0
        %1335 = vmatpush1.bf16.msra.mxu0 0
        %1336 = vmatprep.subr.bf16.mxu0 0
        %1337 = vmatpush1.bf16.msra.mxu0 0
        %1338 = vmatprep.subr.bf16.mxu0 0
        %1339 = vmatpush1.bf16.msra.mxu0 0
        %1340 = vmatprep.subr.bf16.mxu0 0
        %1341 = vmatpush1.bf16.msra.mxu0 0
        %1342 = vmatprep.subr.bf16.mxu0 0
        %1343 = vmatpush1.bf16.msra.mxu0 0
        %1344 = vmatprep.subr.bf16.mxu0 0
        %1345 = vmatpush1.bf16.msra.mxu0 0
        %1346 = vmatprep.subr.bf16.mxu0 0
        %1347 = vmatpush1.bf16.msra.mxu0 0
        %1348 = vmatprep.mubr.bf16.mxu0 0
        %1349 = vmatmul.mubr.bf16.gmra.mrb[0].mxu0 %v1250
        %v1350 = vpop.f32.mrb[0].mxu0
        %v1351 = vadd.f32 %v1267, %v1350
        %v1352 = vpop.f32.mrb[0].mxu0
        %v1353 = vpop.f32.mrb[0].mxu0
        %v1354 = vpop.f32.mrb[0].mxu0
        %1355 = vdwg.mxu0
        %v1356 = vmax.f32 %v1351, 0.0
        %v1357 = vpack.c.bf16 %v1356, %v1356
        %v1358 = vld [vmem:[#allocation11] sm:$0xf]
        %v1359 = vld [vmem:[#allocation11 + $0x4] sm:$0xf]
        %v1360 = vld [vmem:[#allocation11 + $0x8] sm:$0xf]
        %v1361 = vld [vmem:[#allocation11 + $0xc] sm:$0xf]
        %v1362 = vld [vmem:[#allocation11 + $0x10] sm:$0xf]
        %v1363 = vld [vmem:[#allocation11 + $0x14] sm:$0xf]
        %v1364 = vld [vmem:[#allocation11 + $0x18] sm:$0xf]
        %v1365 = vld [vmem:[#allocation11 + $0x1c] sm:$0xf]
        %v1366 = vld [vmem:[#allocation11 + $0x20] sm:$0xf]
        %v1367 = vld [vmem:[#allocation11 + $0x24] sm:$0xf]
        %v1368 = vld [vmem:[#allocation11 + $0x28] sm:$0xf]
        %v1369 = vld [vmem:[#allocation11 + $0x2c] sm:$0xf]
        %v1370 = vld [vmem:[#allocation11 + $0x30] sm:$0xf]
        %v1371 = vld [vmem:[#allocation11 + $0x34] sm:$0xf]
        %v1372 = vld [vmem:[#allocation11 + $0x38] sm:$0xf]
        %v1373 = vld [vmem:[#allocation11 + $0x3c] sm:$0xf]
        %v1374 = vld [vmem:[%s9] sm:$0x1]
        %v1391 = vunpack.c.l.b16 %v1358
        %v1392 = vunpack.c.l.b16 %v1359
        %v1393 = vunpack.c.l.b16 %v1360
        %v1394 = vunpack.c.l.b16 %v1361
        %v1395 = vunpack.c.l.b16 %v1362
        %v1396 = vunpack.c.l.b16 %v1363
        %v1397 = vunpack.c.l.b16 %v1364
        %v1398 = vunpack.c.l.b16 %v1365
        %v1399 = vunpack.c.l.b16 %v1366
        %v1400 = vunpack.c.l.b16 %v1367
        %v1401 = vunpack.c.l.b16 %v1368
        %v1402 = vunpack.c.l.b16 %v1369
        %v1403 = vunpack.c.l.b16 %v1370
        %v1404 = vunpack.c.l.b16 %v1371
        %v1405 = vunpack.c.l.b16 %v1372
        %v1406 = vunpack.c.l.b16 %v1373
        %v1407 = vpack.c.b16 %v1392, %v1391
        %v1408 = vpack.c.b16 %v1394, %v1393
        %v1409 = vpack.c.b16 %v1396, %v1395
        %v1410 = vpack.c.b16 %v1398, %v1397
        %v1411 = vpack.c.b16 %v1400, %v1399
        %v1412 = vpack.c.b16 %v1402, %v1401
        %v1413 = vpack.c.b16 %v1404, %v1403
        %v1414 = vpack.c.b16 %v1406, %v1405
        %1423 = vmatprep.subr.bf16.mxu0 0
        %1424 = vmatpush1.bf16.msra.mxu0 %v1407
        %1425 = vmatprep.subr.bf16.mxu0 0
        %1426 = vmatpush1.bf16.msra.mxu0 %v1408
        %1427 = vmatprep.subr.bf16.mxu0 0
        %1428 = vmatpush1.bf16.msra.mxu0 %v1409
        %1429 = vmatprep.subr.bf16.mxu0 0
        %1430 = vmatpush1.bf16.msra.mxu0 %v1410
        %1431 = vmatprep.subr.bf16.mxu0 0
        %1432 = vmatpush1.bf16.msra.mxu0 %v1411
        %1433 = vmatprep.subr.bf16.mxu0 0
        %1434 = vmatpush1.bf16.msra.mxu0 %v1412
        %1435 = vmatprep.subr.bf16.mxu0 0
        %1436 = vmatpush1.bf16.msra.mxu0 %v1413
        %1437 = vmatprep.subr.bf16.mxu0 0
        %1438 = vmatpush1.bf16.msra.mxu0 %v1414
        %1439 = vmatprep.subr.bf16.mxu0 0
        %1440 = vmatpush1.bf16.msra.mxu0 0
        %1441 = vmatprep.subr.bf16.mxu0 0
        %1442 = vmatpush1.bf16.msra.mxu0 0
        %1443 = vmatprep.subr.bf16.mxu0 0
        %1444 = vmatpush1.bf16.msra.mxu0 0
        %1445 = vmatprep.subr.bf16.mxu0 0
        %1446 = vmatpush1.bf16.msra.mxu0 0
        %1447 = vmatprep.subr.bf16.mxu0 0
        %1448 = vmatpush1.bf16.msra.mxu0 0
        %1449 = vmatprep.subr.bf16.mxu0 0
        %1450 = vmatpush1.bf16.msra.mxu0 0
        %1451 = vmatprep.subr.bf16.mxu0 0
        %1452 = vmatpush1.bf16.msra.mxu0 0
        %1453 = vmatprep.subr.bf16.mxu0 0
        %1454 = vmatpush1.bf16.msra.mxu0 0
        %1455 = vmatprep.mubr.bf16.mxu0 0
        %1456 = vmatmul.mubr.bf16.gmra.mrb[0].mxu0 %v1357
        %v1457 = vpop.f32.mrb[0].mxu0
        %v1458 = vadd.f32 %v1374, %v1457
        %v1459 = vpop.f32.mrb[0].mxu0
        %v1460 = vpop.f32.mrb[0].mxu0
        %v1461 = vpop.f32.mrb[0].mxu0
        %1462 = vdwg.mxu0
        %vm1463 = vcmask 1040384
        %v1464 = vsel %vm1463, %v1458, -inf
        %1465 = vmax.xlane.f32.xlu0 %v1464
        %v1466 = vpop.xlane.xlu0 %1465
        %v1467 = vsub.f32 %v1458, %v1466
        %v1468 = vmul.f32 %v1467, 1.442695
        %v1469 = vpow.pop %v1468
        %v1470 = vsel %vm1463, %v1469, 0.0
        %1471 = vadd.xlane.f32.xlu0 %v1470
        %v1472 = vpop.xlane.xlu0 %1471
        %v1473 = vrcp.pop %v1472
        %v1474 = vmul.f32 %v1469, %v1473
        %1475 = vst [vmem:[%s472] sm:$0x1] %v1474
        %s1476 = sand.u32 %s279, 1
        %s1477 = scalar_lea.sflag [#allocation5], %s1476
        %s1478 = sand.u32 %s279, 1
        %s1479 = scalar_lea.vmem [#allocation12], %s1478
        // Predicated region
        $region92: #{tpu_custom_call.1} parent=63 // pred_check
          %p1480 = pneg %p289
        $region93: #{tpu_custom_call.1} parent=63 // pred_check_branch
          %1482 = sbr.rel (%p1480) target = $region95
        $region94: #{tpu_custom_call.1} parent=63 // pred_region
          %s1484 = ssub.s32 16, 16
          %1485 = vsyncadd %s1477, %s1484
          %s1486 = smul.addr %s30, 16
          %s1487 = scalar_lea.hbm %s11, %s1486
          %s1489 = sshll.u32 %s1479, 4
          %s1490 = int_to_ptr.vmem [resolvable:$true] %s1489
          %1492 = dma.vmem_to_hbm [thread:$0]  %s1490, 16, %s1487, %s1477
        $region95: #{tpu_custom_call.1} parent=63 // pred_fallthru
          _
      $region64: #{tpu_custom_call.1} parent=5 // pred_fallthru
        _
      %p1493 = scmp.le.s32.totalorder 2, %s25
      // Predicated region
      $region96: #{tpu_custom_call.1} parent=5 // pred_check
        %p1494 = pneg %p1493
      $region97: #{tpu_custom_call.1} parent=5 // pred_check_branch
        %1496 = sbr.rel (%p1494) target = $region99
      $region98: #{tpu_custom_call.1} parent=5 // pred_region
        %s1497 = ssub.s32 %s25, 2
        // Predicated region
        $region100: #{tpu_custom_call.1} parent=98 // pred_check
          %p1498 = pneg %p295
        $region101: #{tpu_custom_call.1} parent=98 // pred_check_branch
          %1500 = sbr.rel (%p1498) target = $region103
        $region102: #{tpu_custom_call.1} parent=98 // pred_region
          %s1501 = sand.u32 %s280, 1
          %s1502 = scalar_lea.sflag [#allocation5], %s1501
          %s1503 = sand.u32 %s280, 1
          %s1504 = scalar_lea.vmem [#allocation12], %s1503
          %1505 = dma.done %s1502, 16
        $region103: #{tpu_custom_call.1} parent=98 // pred_fallthru
          _
      $region99: #{tpu_custom_call.1} parent=5 // pred_fallthru
        _
    $region6: #{tpu_custom_call.1} parent=1 // loop_footer
      %s29 = sadd.s32 1, %s25
    $region7: #{tpu_custom_call.1} parent=1 // loop_footer_branch
      %24 = sbr.rel target = $region3
    $region8: #{tpu_custom_call.1} parent=1 // loop_exit
      _
    %1506 = vsyncpa [#allocation4], 1
    %s1507 = scalar_lea.sflag [#allocation4], 1
    %1508 = vsyncpa %s1507, 1
    %1509 = vsyncpa [#allocation7], 1
    %1510 = vsyncpa [#allocation10], 1
    %1511 = vsyncpa [#allocation5], 1
    %s1512 = scalar_lea.sflag [#allocation5], 1
    %1513 = vsyncpa %s1512, 1

</llo_original>
